<compile_context>
chip_gen: v7x
topology: tpu7x:2x2x1
jax: 0.10.0
libtpu: 0.0.40
codegen_flags: <defaults>
</compile_context>

<pallas_src>
import functools

import jax
import jax.numpy as jnp
from jax.experimental import pallas as pl
from jax.experimental.pallas import tpu as pltpu


def lstm_seq_kernel(x_ref, wih_ref, whh_hbm_ref, b_ref, out_ref, whh_vmem, dma_sem):
    """Full-sequence LSTM; writes h_T to out_ref.

    x_ref      : (S*B, D)  bf16  time-major flattened input (rows t*B .. t*B+B-1 = step t)
    wih_ref    : (D, 4H)   bf16  W_ih^T, gate columns reordered to [i, f, o, g]
    whh_hbm_ref: (H, 4H)   bf16  W_hh^T in HBM (memory_space=pl.ANY), same gate order
    b_ref      : (1, 4H)   f32   b_ih + b_hh, same gate order
    out_ref    : (B, H)    f32   final hidden state
    whh_vmem   : (H, 4H)   bf16  VMEM scratch for W_hh^T
    dma_sem    : DMA semaphore for the W_hh copy
    """
    B, H = out_ref.shape
    S = x_ref.shape[0] // B

    # Kick off the 512 KiB W_hh HBM->VMEM copy; hide it behind the input projection.
    whh_cp = pltpu.make_async_copy(whh_hbm_ref, whh_vmem, dma_sem)
    whh_cp.start()

    # Hoisted input projection (no recurrent dependency): one (S*B, D) @ (D, 4H) MXU
    # matmul, kept as a register value -- no VMEM scratch round trip.
    xw = (
        jnp.dot(x_ref[...], wih_ref[...], preferred_element_type=jnp.float32)
        + b_ref[...]
    )

    whh_cp.wait()

    h = jnp.zeros((B, H), jnp.float32)
    c = jnp.zeros((B, H), jnp.float32)

    # S is static -> trace-time unroll; xw slices below are static (no masked vlds).
    for t in range(S):
        gates = xw[t * B:(t + 1) * B, :] + jnp.dot(
            h.astype(jnp.bfloat16), whh_vmem[...],
            preferred_element_type=jnp.float32)
        # Gate order [i, f, o, g]: one sigmoid pass over (B, 3H), one tanh over (B, H).
        ifo = jax.nn.sigmoid(gates[:, 0:3 * H])
        g = jnp.tanh(gates[:, 3 * H:4 * H])
        i_g = ifo[:, 0 * H:1 * H]
        f_g = ifo[:, 1 * H:2 * H]
        o_g = ifo[:, 2 * H:3 * H]
        c = f_g * c + i_g * g
        h = o_g * jnp.tanh(c)

    out_ref[...] = h.astype(out_ref.dtype)


def prepare_lstm_params(w_ih, w_hh, b_ih, b_hh):
    """One-time weight layout prep (call at model load, NOT per forward).

    PyTorch packs gates as [i, f, g, o]; we reorder to [i, f, o, g], transpose so the
    kernel does plain (M, K) @ (K, 4H) matmuls, cast weights to bf16 and fuse the biases.
    """
    H = w_hh.shape[1]

    def reorder(w):  # slices along axis 0 of the packed-gate dimension
        i, f, g, o = w[0:H], w[H:2 * H], w[2 * H:3 * H], w[3 * H:4 * H]
        return jnp.concatenate([i, f, o, g], axis=0)

    wih_t = reorder(jnp.asarray(w_ih, jnp.float32)).T.astype(jnp.bfloat16)   # (D, 4H)
    whh_t = reorder(jnp.asarray(w_hh, jnp.float32)).T.astype(jnp.bfloat16)   # (H, 4H)
    bias = reorder(jnp.asarray(b_ih, jnp.float32)
                   + jnp.asarray(b_hh, jnp.float32)).reshape(1, 4 * H)       # (1, 4H)
    return wih_t, whh_t, bias


@jax.jit
def base_network_forward(state, wih_t, whh_t, bias):
    """Pallas LSTM forward for BaseNetwork; returns lstm_out[:, -1, :] -> (B, H).

    state : (B, S, D) float input
    wih_t, whh_t, bias : outputs of prepare_lstm_params (pre-laid-out weights)
    """
    B, S, D = state.shape
    H = whh_t.shape[0]

    # Time-major flatten so timestep t's rows are contiguous; cast to bf16 (MXU operand).
    x2d = jnp.swapaxes(state, 0, 1).reshape(S * B, D).astype(jnp.bfloat16)

    vmem_spec = pl.BlockSpec(memory_space=pltpu.MemorySpace.VMEM)
    hbm_spec = pl.BlockSpec(memory_space=pl.ANY)   # W_hh stays in HBM; kernel DMAs it

    # Single gridless invocation: whole working set (~0.65 MiB) fits any generation's
    # VMEM; no per-step pipeline overhead, weights not double-buffered.
    return pl.pallas_call(
        lstm_seq_kernel,
        out_shape=jax.ShapeDtypeStruct((B, H), jnp.float32),
        in_specs=[vmem_spec, vmem_spec, hbm_spec, vmem_spec],
        out_specs=vmem_spec,
        scratch_shapes=[
            pltpu.VMEM((H, 4 * H), jnp.bfloat16),   # W_hh^T landing buffer
            pltpu.SemaphoreType.DMA,
        ],
    )(x2d, wih_t, whh_t, bias)


def reference_lstm_last(state, w_ih, w_hh, b_ih, b_hh):
    """Pure-JAX (f32) reference of PyTorch nn.LSTM (single layer, batch_first)."""
    B, S, D = state.shape
    H = w_hh.shape[1]

    def step(carry, x_t):
        h, c = carry
        gates = x_t @ w_ih.T + b_ih + h @ w_hh.T + b_hh
        i = jax.nn.sigmoid(gates[:, 0 * H:1 * H])
        f = jax.nn.sigmoid(gates[:, 1 * H:2 * H])
        g = jnp.tanh(gates[:, 2 * H:3 * H])
        o = jax.nn.sigmoid(gates[:, 3 * H:4 * H])
        c = f * c + i * g
        h = o * jnp.tanh(c)
        return (h, c), None

    h0 = jnp.zeros((B, H), jnp.float32)
    c0 = jnp.zeros((B, H), jnp.float32)
    (h_T, _), _ = jax.lax.scan(step, (h0, c0), jnp.swapaxes(state, 0, 1))
    return h_T


if __name__ == "__main__":
    # Module defaults: input_dim=64, lstm_hidden_size=256
    INPUT_DIM = 64
    HIDDEN = 256
    BATCH = 2
    SEQ = 8

    key = jax.random.PRNGKey(0)
    k_x, k1, k2, k3, k4 = jax.random.split(key, 5)

    # Deterministic param init, matching PyTorch LSTM's U(-1/sqrt(H), 1/sqrt(H)).
    bound = 1.0 / jnp.sqrt(jnp.float32(HIDDEN))
    w_ih = jax.random.uniform(k1, (4 * HIDDEN, INPUT_DIM), jnp.float32, -bound, bound)
    w_hh = jax.random.uniform(k2, (4 * HIDDEN, HIDDEN), jnp.float32, -bound, bound)
    b_ih = jax.random.uniform(k3, (4 * HIDDEN,), jnp.float32, -bound, bound)
    b_hh = jax.random.uniform(k4, (4 * HIDDEN,), jnp.float32, -bound, bound)

    state = jax.random.normal(k_x, (BATCH, SEQ, INPUT_DIM), jnp.float32)

    # One-time weight layout prep (model-load time), then per-call forward.
    wih_t, whh_t, bias = prepare_lstm_params(w_ih, w_hh, b_ih, b_hh)

    out = base_network_forward(state, wih_t, whh_t, bias)
    out = jax.block_until_ready(out)
    assert out.shape == (BATCH, HIDDEN)

    ref = reference_lstm_last(state, w_ih, w_hh, b_ih, b_hh)
    # bf16 MXU operands with f32 accumulation => slightly looser tolerance than pure f32.
    assert jnp.allclose(out, ref, atol=2e-2, rtol=2e-2), "mismatch vs reference LSTM"

    print("KERNEL_OK")
</pallas_src>

<mosaic_0001>
module attributes {stable_mosaic.version = 11 : i64} {
  func.func @lstm_seq_kernel(%arg0: memref<16x64xbf16, #tpu.memory_space<vmem>>, %arg1: memref<64x1024xbf16, #tpu.memory_space<vmem>>, %arg2: memref<256x1024xbf16, #tpu.memory_space<any>>, %arg3: memref<1x1024xf32, #tpu.memory_space<vmem>>, %arg4: memref<2x256xf32, #tpu.memory_space<vmem>>, %arg5: memref<256x1024xbf16, #tpu.memory_space<vmem>>, %arg6: memref<!tpu.dma_semaphore, #tpu.memory_space<semaphore_mem>>) attributes {dimension_semantics = [], scalar_prefetch = 0 : i64, scratch_operands = 2 : i64, tpu.core_type = #tpu.core_type<tc>} {
    tpu.enqueue_dma source(%arg2 : memref<256x1024xbf16, #tpu.memory_space<any>>) target(%arg5 : memref<256x1024xbf16, #tpu.memory_space<vmem>>) target_semaphore(%arg6 : memref<!tpu.dma_semaphore, #tpu.memory_space<semaphore_mem>>)
    %c0 = arith.constant 0 : index
    %c0_0 = arith.constant 0 : index
    %0 = vector.load %arg0[%c0, %c0_0] : memref<16x64xbf16, #tpu.memory_space<vmem>>, vector<16x64xbf16>
    %c0_1 = arith.constant 0 : index
    %c0_2 = arith.constant 0 : index
    %1 = vector.load %arg1[%c0_1, %c0_2] : memref<64x1024xbf16, #tpu.memory_space<vmem>>, vector<64x1024xbf16>
    %cst = arith.constant dense<0.000000e+00> : vector<16x1024xf32>
    %2 = tpu.matmul %0, %1, %cst {dimension_numbers = #tpu.dot_dimension_numbers<[1], [0], [0], [1], [0, 0, 1, 1], [], []>} : vector<16x64xbf16>, vector<64x1024xbf16>, vector<16x1024xf32> -> vector<16x1024xf32>
    %c0_3 = arith.constant 0 : index
    %c0_4 = arith.constant 0 : index
    %3 = vector.load %arg3[%c0_3, %c0_4] : memref<1x1024xf32, #tpu.memory_space<vmem>>, vector<1x1024xf32>
    %4 = vector.broadcast %3 : vector<1x1024xf32> to vector<16x1024xf32>
    %5 = arith.addf %2, %4 : vector<16x1024xf32>
    tpu.wait_dma2 semaphore(%arg6 : memref<!tpu.dma_semaphore, #tpu.memory_space<semaphore_mem>>) src(%arg2 : memref<256x1024xbf16, #tpu.memory_space<any>>) dst(%arg5 : memref<256x1024xbf16, #tpu.memory_space<vmem>>)
    %cst_5 = arith.constant 0.000000e+00 : f32
    %6 = vector.broadcast %cst_5 : f32 to vector<2x256xf32>
    %cst_6 = arith.constant 0.000000e+00 : f32
    %7 = vector.broadcast %cst_6 : f32 to vector<2x256xf32>
    %8 = vector.extract_strided_slice %5 {offsets = [0, 0], sizes = [2, 1024], strides = [1, 1]} : vector<16x1024xf32> to vector<2x1024xf32>
    %9 = arith.truncf %6 : vector<2x256xf32> to vector<2x256xbf16>
    %c0_7 = arith.constant 0 : index
    %c0_8 = arith.constant 0 : index
    %10 = vector.load %arg5[%c0_7, %c0_8] : memref<256x1024xbf16, #tpu.memory_space<vmem>>, vector<256x1024xbf16>
    %cst_9 = arith.constant dense<0.000000e+00> : vector<2x1024xf32>
    %11 = tpu.matmul %9, %10, %cst_9 {dimension_numbers = #tpu.dot_dimension_numbers<[1], [0], [0], [1], [0, 0, 1, 1], [], []>} : vector<2x256xbf16>, vector<256x1024xbf16>, vector<2x1024xf32> -> vector<2x1024xf32>
    %12 = arith.addf %8, %11 : vector<2x1024xf32>
    %13 = vector.extract_strided_slice %12 {offsets = [0, 0], sizes = [2, 768], strides = [1, 1]} : vector<2x1024xf32> to vector<2x768xf32>
    %14 = arith.negf %13 : vector<2x768xf32>
    %15 = math.exp %14 : vector<2x768xf32>
    %cst_10 = arith.constant 1.000000e+00 : f32
    %16 = vector.broadcast %cst_10 : f32 to vector<2x768xf32>
    %17 = arith.addf %16, %15 : vector<2x768xf32>
    %18 = arith.divf %16, %17 : vector<2x768xf32>
    %19 = vector.extract_strided_slice %12 {offsets = [0, 768], sizes = [2, 256], strides = [1, 1]} : vector<2x1024xf32> to vector<2x256xf32>
    %20 = math.tanh %19 : vector<2x256xf32>
    %21 = vector.extract_strided_slice %18 {offsets = [0, 0], sizes = [2, 256], strides = [1, 1]} : vector<2x768xf32> to vector<2x256xf32>
    %22 = vector.extract_strided_slice %18 {offsets = [0, 256], sizes = [2, 256], strides = [1, 1]} : vector<2x768xf32> to vector<2x256xf32>
    %23 = vector.extract_strided_slice %18 {offsets = [0, 512], sizes = [2, 256], strides = [1, 1]} : vector<2x768xf32> to vector<2x256xf32>
    %24 = arith.mulf %22, %7 : vector<2x256xf32>
    %25 = arith.mulf %21, %20 : vector<2x256xf32>
    %26 = arith.addf %24, %25 : vector<2x256xf32>
    %27 = math.tanh %26 : vector<2x256xf32>
    %28 = arith.mulf %23, %27 : vector<2x256xf32>
    %29 = vector.extract_strided_slice %5 {offsets = [2, 0], sizes = [2, 1024], strides = [1, 1]} : vector<16x1024xf32> to vector<2x1024xf32>
    %30 = arith.truncf %28 : vector<2x256xf32> to vector<2x256xbf16>
    %c0_11 = arith.constant 0 : index
    %c0_12 = arith.constant 0 : index
    %31 = vector.load %arg5[%c0_11, %c0_12] : memref<256x1024xbf16, #tpu.memory_space<vmem>>, vector<256x1024xbf16>
    %cst_13 = arith.constant dense<0.000000e+00> : vector<2x1024xf32>
    %32 = tpu.matmul %30, %31, %cst_13 {dimension_numbers = #tpu.dot_dimension_numbers<[1], [0], [0], [1], [0, 0, 1, 1], [], []>} : vector<2x256xbf16>, vector<256x1024xbf16>, vector<2x1024xf32> -> vector<2x1024xf32>
    %33 = arith.addf %29, %32 : vector<2x1024xf32>
    %34 = vector.extract_strided_slice %33 {offsets = [0, 0], sizes = [2, 768], strides = [1, 1]} : vector<2x1024xf32> to vector<2x768xf32>
    %35 = arith.negf %34 : vector<2x768xf32>
    %36 = math.exp %35 : vector<2x768xf32>
    %cst_14 = arith.constant 1.000000e+00 : f32
    %37 = vector.broadcast %cst_14 : f32 to vector<2x768xf32>
    %38 = arith.addf %37, %36 : vector<2x768xf32>
    %39 = arith.divf %37, %38 : vector<2x768xf32>
    %40 = vector.extract_strided_slice %33 {offsets = [0, 768], sizes = [2, 256], strides = [1, 1]} : vector<2x1024xf32> to vector<2x256xf32>
    %41 = math.tanh %40 : vector<2x256xf32>
    %42 = vector.extract_strided_slice %39 {offsets = [0, 0], sizes = [2, 256], strides = [1, 1]} : vector<2x768xf32> to vector<2x256xf32>
    %43 = vector.extract_strided_slice %39 {offsets = [0, 256], sizes = [2, 256], strides = [1, 1]} : vector<2x768xf32> to vector<2x256xf32>
    %44 = vector.extract_strided_slice %39 {offsets = [0, 512], sizes = [2, 256], strides = [1, 1]} : vector<2x768xf32> to vector<2x256xf32>
    %45 = arith.mulf %43, %26 : vector<2x256xf32>
    %46 = arith.mulf %42, %41 : vector<2x256xf32>
    %47 = arith.addf %45, %46 : vector<2x256xf32>
    %48 = math.tanh %47 : vector<2x256xf32>
    %49 = arith.mulf %44, %48 : vector<2x256xf32>
    %50 = vector.extract_strided_slice %5 {offsets = [4, 0], sizes = [2, 1024], strides = [1, 1]} : vector<16x1024xf32> to vector<2x1024xf32>
    %51 = arith.truncf %49 : vector<2x256xf32> to vector<2x256xbf16>
    %c0_15 = arith.constant 0 : index
    %c0_16 = arith.constant 0 : index
    %52 = vector.load %arg5[%c0_15, %c0_16] : memref<256x1024xbf16, #tpu.memory_space<vmem>>, vector<256x1024xbf16>
    %cst_17 = arith.constant dense<0.000000e+00> : vector<2x1024xf32>
    %53 = tpu.matmul %51, %52, %cst_17 {dimension_numbers = #tpu.dot_dimension_numbers<[1], [0], [0], [1], [0, 0, 1, 1], [], []>} : vector<2x256xbf16>, vector<256x1024xbf16>, vector<2x1024xf32> -> vector<2x1024xf32>
    %54 = arith.addf %50, %53 : vector<2x1024xf32>
    %55 = vector.extract_strided_slice %54 {offsets = [0, 0], sizes = [2, 768], strides = [1, 1]} : vector<2x1024xf32> to vector<2x768xf32>
    %56 = arith.negf %55 : vector<2x768xf32>
    %57 = math.exp %56 : vector<2x768xf32>
    %cst_18 = arith.constant 1.000000e+00 : f32
    %58 = vector.broadcast %cst_18 : f32 to vector<2x768xf32>
    %59 = arith.addf %58, %57 : vector<2x768xf32>
    %60 = arith.divf %58, %59 : vector<2x768xf32>
    %61 = vector.extract_strided_slice %54 {offsets = [0, 768], sizes = [2, 256], strides = [1, 1]} : vector<2x1024xf32> to vector<2x256xf32>
    %62 = math.tanh %61 : vector<2x256xf32>
    %63 = vector.extract_strided_slice %60 {offsets = [0, 0], sizes = [2, 256], strides = [1, 1]} : vector<2x768xf32> to vector<2x256xf32>
    %64 = vector.extract_strided_slice %60 {offsets = [0, 256], sizes = [2, 256], strides = [1, 1]} : vector<2x768xf32> to vector<2x256xf32>
    %65 = vector.extract_strided_slice %60 {offsets = [0, 512], sizes = [2, 256], strides = [1, 1]} : vector<2x768xf32> to vector<2x256xf32>
    %66 = arith.mulf %64, %47 : vector<2x256xf32>
    %67 = arith.mulf %63, %62 : vector<2x256xf32>
    %68 = arith.addf %66, %67 : vector<2x256xf32>
    %69 = math.tanh %68 : vector<2x256xf32>
    %70 = arith.mulf %65, %69 : vector<2x256xf32>
    %71 = vector.extract_strided_slice %5 {offsets = [6, 0], sizes = [2, 1024], strides = [1, 1]} : vector<16x1024xf32> to vector<2x1024xf32>
    %72 = arith.truncf %70 : vector<2x256xf32> to vector<2x256xbf16>
    %c0_19 = arith.constant 0 : index
    %c0_20 = arith.constant 0 : index
    %73 = vector.load %arg5[%c0_19, %c0_20] : memref<256x1024xbf16, #tpu.memory_space<vmem>>, vector<256x1024xbf16>
    %cst_21 = arith.constant dense<0.000000e+00> : vector<2x1024xf32>
    %74 = tpu.matmul %72, %73, %cst_21 {dimension_numbers = #tpu.dot_dimension_numbers<[1], [0], [0], [1], [0, 0, 1, 1], [], []>} : vector<2x256xbf16>, vector<256x1024xbf16>, vector<2x1024xf32> -> vector<2x1024xf32>
    %75 = arith.addf %71, %74 : vector<2x1024xf32>
    %76 = vector.extract_strided_slice %75 {offsets = [0, 0], sizes = [2, 768], strides = [1, 1]} : vector<2x1024xf32> to vector<2x768xf32>
    %77 = arith.negf %76 : vector<2x768xf32>
    %78 = math.exp %77 : vector<2x768xf32>
    %cst_22 = arith.constant 1.000000e+00 : f32
    %79 = vector.broadcast %cst_22 : f32 to vector<2x768xf32>
    %80 = arith.addf %79, %78 : vector<2x768xf32>
    %81 = arith.divf %79, %80 : vector<2x768xf32>
    %82 = vector.extract_strided_slice %75 {offsets = [0, 768], sizes = [2, 256], strides = [1, 1]} : vector<2x1024xf32> to vector<2x256xf32>
    %83 = math.tanh %82 : vector<2x256xf32>
    %84 = vector.extract_strided_slice %81 {offsets = [0, 0], sizes = [2, 256], strides = [1, 1]} : vector<2x768xf32> to vector<2x256xf32>
    %85 = vector.extract_strided_slice %81 {offsets = [0, 256], sizes = [2, 256], strides = [1, 1]} : vector<2x768xf32> to vector<2x256xf32>
    %86 = vector.extract_strided_slice %81 {offsets = [0, 512], sizes = [2, 256], strides = [1, 1]} : vector<2x768xf32> to vector<2x256xf32>
    %87 = arith.mulf %85, %68 : vector<2x256xf32>
    %88 = arith.mulf %84, %83 : vector<2x256xf32>
    %89 = arith.addf %87, %88 : vector<2x256xf32>
    %90 = math.tanh %89 : vector<2x256xf32>
    %91 = arith.mulf %86, %90 : vector<2x256xf32>
    %92 = vector.extract_strided_slice %5 {offsets = [8, 0], sizes = [2, 1024], strides = [1, 1]} : vector<16x1024xf32> to vector<2x1024xf32>
    %93 = arith.truncf %91 : vector<2x256xf32> to vector<2x256xbf16>
    %c0_23 = arith.constant 0 : index
    %c0_24 = arith.constant 0 : index
    %94 = vector.load %arg5[%c0_23, %c0_24] : memref<256x1024xbf16, #tpu.memory_space<vmem>>, vector<256x1024xbf16>
    %cst_25 = arith.constant dense<0.000000e+00> : vector<2x1024xf32>
    %95 = tpu.matmul %93, %94, %cst_25 {dimension_numbers = #tpu.dot_dimension_numbers<[1], [0], [0], [1], [0, 0, 1, 1], [], []>} : vector<2x256xbf16>, vector<256x1024xbf16>, vector<2x1024xf32> -> vector<2x1024xf32>
    %96 = arith.addf %92, %95 : vector<2x1024xf32>
    %97 = vector.extract_strided_slice %96 {offsets = [0, 0], sizes = [2, 768], strides = [1, 1]} : vector<2x1024xf32> to vector<2x768xf32>
    %98 = arith.negf %97 : vector<2x768xf32>
    %99 = math.exp %98 : vector<2x768xf32>
    %cst_26 = arith.constant 1.000000e+00 : f32
    %100 = vector.broadcast %cst_26 : f32 to vector<2x768xf32>
    %101 = arith.addf %100, %99 : vector<2x768xf32>
    %102 = arith.divf %100, %101 : vector<2x768xf32>
    %103 = vector.extract_strided_slice %96 {offsets = [0, 768], sizes = [2, 256], strides = [1, 1]} : vector<2x1024xf32> to vector<2x256xf32>
    %104 = math.tanh %103 : vector<2x256xf32>
    %105 = vector.extract_strided_slice %102 {offsets = [0, 0], sizes = [2, 256], strides = [1, 1]} : vector<2x768xf32> to vector<2x256xf32>
    %106 = vector.extract_strided_slice %102 {offsets = [0, 256], sizes = [2, 256], strides = [1, 1]} : vector<2x768xf32> to vector<2x256xf32>
    %107 = vector.extract_strided_slice %102 {offsets = [0, 512], sizes = [2, 256], strides = [1, 1]} : vector<2x768xf32> to vector<2x256xf32>
    %108 = arith.mulf %106, %89 : vector<2x256xf32>
    %109 = arith.mulf %105, %104 : vector<2x256xf32>
    %110 = arith.addf %108, %109 : vector<2x256xf32>
    %111 = math.tanh %110 : vector<2x256xf32>
    %112 = arith.mulf %107, %111 : vector<2x256xf32>
    %113 = vector.extract_strided_slice %5 {offsets = [10, 0], sizes = [2, 1024], strides = [1, 1]} : vector<16x1024xf32> to vector<2x1024xf32>
    %114 = arith.truncf %112 : vector<2x256xf32> to vector<2x256xbf16>
    %c0_27 = arith.constant 0 : index
    %c0_28 = arith.constant 0 : index
    %115 = vector.load %arg5[%c0_27, %c0_28] : memref<256x1024xbf16, #tpu.memory_space<vmem>>, vector<256x1024xbf16>
    %cst_29 = arith.constant dense<0.000000e+00> : vector<2x1024xf32>
    %116 = tpu.matmul %114, %115, %cst_29 {dimension_numbers = #tpu.dot_dimension_numbers<[1], [0], [0], [1], [0, 0, 1, 1], [], []>} : vector<2x256xbf16>, vector<256x1024xbf16>, vector<2x1024xf32> -> vector<2x1024xf32>
    %117 = arith.addf %113, %116 : vector<2x1024xf32>
    %118 = vector.extract_strided_slice %117 {offsets = [0, 0], sizes = [2, 768], strides = [1, 1]} : vector<2x1024xf32> to vector<2x768xf32>
    %119 = arith.negf %118 : vector<2x768xf32>
    %120 = math.exp %119 : vector<2x768xf32>
    %cst_30 = arith.constant 1.000000e+00 : f32
    %121 = vector.broadcast %cst_30 : f32 to vector<2x768xf32>
    %122 = arith.addf %121, %120 : vector<2x768xf32>
    %123 = arith.divf %121, %122 : vector<2x768xf32>
    %124 = vector.extract_strided_slice %117 {offsets = [0, 768], sizes = [2, 256], strides = [1, 1]} : vector<2x1024xf32> to vector<2x256xf32>
    %125 = math.tanh %124 : vector<2x256xf32>
    %126 = vector.extract_strided_slice %123 {offsets = [0, 0], sizes = [2, 256], strides = [1, 1]} : vector<2x768xf32> to vector<2x256xf32>
    %127 = vector.extract_strided_slice %123 {offsets = [0, 256], sizes = [2, 256], strides = [1, 1]} : vector<2x768xf32> to vector<2x256xf32>
    %128 = vector.extract_strided_slice %123 {offsets = [0, 512], sizes = [2, 256], strides = [1, 1]} : vector<2x768xf32> to vector<2x256xf32>
    %129 = arith.mulf %127, %110 : vector<2x256xf32>
    %130 = arith.mulf %126, %125 : vector<2x256xf32>
    %131 = arith.addf %129, %130 : vector<2x256xf32>
    %132 = math.tanh %131 : vector<2x256xf32>
    %133 = arith.mulf %128, %132 : vector<2x256xf32>
    %134 = vector.extract_strided_slice %5 {offsets = [12, 0], sizes = [2, 1024], strides = [1, 1]} : vector<16x1024xf32> to vector<2x1024xf32>
    %135 = arith.truncf %133 : vector<2x256xf32> to vector<2x256xbf16>
    %c0_31 = arith.constant 0 : index
    %c0_32 = arith.constant 0 : index
    %136 = vector.load %arg5[%c0_31, %c0_32] : memref<256x1024xbf16, #tpu.memory_space<vmem>>, vector<256x1024xbf16>
    %cst_33 = arith.constant dense<0.000000e+00> : vector<2x1024xf32>
    %137 = tpu.matmul %135, %136, %cst_33 {dimension_numbers = #tpu.dot_dimension_numbers<[1], [0], [0], [1], [0, 0, 1, 1], [], []>} : vector<2x256xbf16>, vector<256x1024xbf16>, vector<2x1024xf32> -> vector<2x1024xf32>
    %138 = arith.addf %134, %137 : vector<2x1024xf32>
    %139 = vector.extract_strided_slice %138 {offsets = [0, 0], sizes = [2, 768], strides = [1, 1]} : vector<2x1024xf32> to vector<2x768xf32>
    %140 = arith.negf %139 : vector<2x768xf32>
    %141 = math.exp %140 : vector<2x768xf32>
    %cst_34 = arith.constant 1.000000e+00 : f32
    %142 = vector.broadcast %cst_34 : f32 to vector<2x768xf32>
    %143 = arith.addf %142, %141 : vector<2x768xf32>
    %144 = arith.divf %142, %143 : vector<2x768xf32>
    %145 = vector.extract_strided_slice %138 {offsets = [0, 768], sizes = [2, 256], strides = [1, 1]} : vector<2x1024xf32> to vector<2x256xf32>
    %146 = math.tanh %145 : vector<2x256xf32>
    %147 = vector.extract_strided_slice %144 {offsets = [0, 0], sizes = [2, 256], strides = [1, 1]} : vector<2x768xf32> to vector<2x256xf32>
    %148 = vector.extract_strided_slice %144 {offsets = [0, 256], sizes = [2, 256], strides = [1, 1]} : vector<2x768xf32> to vector<2x256xf32>
    %149 = vector.extract_strided_slice %144 {offsets = [0, 512], sizes = [2, 256], strides = [1, 1]} : vector<2x768xf32> to vector<2x256xf32>
    %150 = arith.mulf %148, %131 : vector<2x256xf32>
    %151 = arith.mulf %147, %146 : vector<2x256xf32>
    %152 = arith.addf %150, %151 : vector<2x256xf32>
    %153 = math.tanh %152 : vector<2x256xf32>
    %154 = arith.mulf %149, %153 : vector<2x256xf32>
    %155 = vector.extract_strided_slice %5 {offsets = [14, 0], sizes = [2, 1024], strides = [1, 1]} : vector<16x1024xf32> to vector<2x1024xf32>
    %156 = arith.truncf %154 : vector<2x256xf32> to vector<2x256xbf16>
    %c0_35 = arith.constant 0 : index
    %c0_36 = arith.constant 0 : index
    %157 = vector.load %arg5[%c0_35, %c0_36] : memref<256x1024xbf16, #tpu.memory_space<vmem>>, vector<256x1024xbf16>
    %cst_37 = arith.constant dense<0.000000e+00> : vector<2x1024xf32>
    %158 = tpu.matmul %156, %157, %cst_37 {dimension_numbers = #tpu.dot_dimension_numbers<[1], [0], [0], [1], [0, 0, 1, 1], [], []>} : vector<2x256xbf16>, vector<256x1024xbf16>, vector<2x1024xf32> -> vector<2x1024xf32>
    %159 = arith.addf %155, %158 : vector<2x1024xf32>
    %160 = vector.extract_strided_slice %159 {offsets = [0, 0], sizes = [2, 768], strides = [1, 1]} : vector<2x1024xf32> to vector<2x768xf32>
    %161 = arith.negf %160 : vector<2x768xf32>
    %162 = math.exp %161 : vector<2x768xf32>
    %cst_38 = arith.constant 1.000000e+00 : f32
    %163 = vector.broadcast %cst_38 : f32 to vector<2x768xf32>
    %164 = arith.addf %163, %162 : vector<2x768xf32>
    %165 = arith.divf %163, %164 : vector<2x768xf32>
    %166 = vector.extract_strided_slice %159 {offsets = [0, 768], sizes = [2, 256], strides = [1, 1]} : vector<2x1024xf32> to vector<2x256xf32>
    %167 = math.tanh %166 : vector<2x256xf32>
    %168 = vector.extract_strided_slice %165 {offsets = [0, 0], sizes = [2, 256], strides = [1, 1]} : vector<2x768xf32> to vector<2x256xf32>
    %169 = vector.extract_strided_slice %165 {offsets = [0, 256], sizes = [2, 256], strides = [1, 1]} : vector<2x768xf32> to vector<2x256xf32>
    %170 = vector.extract_strided_slice %165 {offsets = [0, 512], sizes = [2, 256], strides = [1, 1]} : vector<2x768xf32> to vector<2x256xf32>
    %171 = arith.mulf %169, %152 : vector<2x256xf32>
    %172 = arith.mulf %168, %167 : vector<2x256xf32>
    %173 = arith.addf %171, %172 : vector<2x256xf32>
    %174 = math.tanh %173 : vector<2x256xf32>
    %175 = arith.mulf %170, %174 : vector<2x256xf32>
    %c0_39 = arith.constant 0 : index
    %c0_40 = arith.constant 0 : index
    %176 = vector.load %arg4[%c0_39, %c0_40] : memref<2x256xf32, #tpu.memory_space<vmem>>, vector<2x256xf32>
    tpu.vector_store %arg4[%c0_39, %c0_40], %175 {strides = array<i32>} : memref<2x256xf32, #tpu.memory_space<vmem>>, vector<2x256xf32>,
    return
  }
}

</mosaic_0001>

<llo_original>
// kernel: base_network_forward.1
$region0: #{base_network_forward.1}
  #allocation0 [shape = 'u32[]', space=smem, size = 0x4, offset = 0x4, fixed_abs, tag = 'smem constant byte address 0x4 - core index']
  #allocation1 [shape = 'u32[144,128]{1,0:T(1,128)}', space=vmem, size = 0x12000, scoped, tag = 'internal scratch']
  #allocation2 [shape = 'bf16[256,1024]{1,0:T(16,128)(2,1)}', space=vmem, size = 0x80000, scoped, tag = 'scratch operand']
  #allocation3 [shape = 's32[1]{0}', space=sflag, size = 0x4, scoped, tag = 'scratch operand']
  #allocation8 [shape = 's32[]', space=sflag, size = 0x4, offset = 0, fixed_abs, tag = 'sflag constant byte address 0x0 - dummy sync flag']
  %s0 = inlined_call_operand.vmem [shape: bf16[16,64], index: 0, kind: input, shape index: {}]
  %s1 = inlined_call_operand.hbm [shape: bf16[64,1024], index: 1, kind: input, shape index: {}]
  %s2 = inlined_call_operand.hbm [shape: bf16[256,1024], index: 2, kind: input, shape index: {}]
  %s3 = inlined_call_operand.vmem [shape: f32[1,1024], index: 3, kind: input, shape index: {}]
  %s4 = inlined_call_operand.hbm [shape: f32[2,256], index: 4, kind: output, shape index: {}]
  %s5 = sld [smem:[#allocation0]]
  $region26: #{base_network_forward.1} parent=0
    _
  %s7 = ssub.s32 1, %s5
  %s8 = scalar_select 0, %s7, %s5
  $region1: #{base_network_forward.1} parent=0
    #allocation4 [shape = 'u8[131072]{0}', space=vmem, size = 0x20000, scoped, tag = 'input window, operand 1, single buffered']
    #allocation5 [shape = 's32[1]{0}', space=sflag, size = 0x4, scoped, tag = 'scoped memory for base_network_forward.1']
    #allocation6 [shape = 's32[1]{0}', space=sflag, size = 0x4, scoped, tag = 'scoped memory for base_network_forward.1']
    #allocation7 [shape = 'u8[2048]{0}', space=vmem, size = 0x800, scoped, tag = 'output window, operand 0, single buffered']
    #allocation9 [shape = 'u32[9]{0}', space=smem, size = 0x24, scoped, tag = 'DMA stride descriptor']
    %9 = vsyncpa [#allocation5], 0
    %10 = vsyncpa [#allocation6], 0
    // Predicated region
    $region2: #{base_network_forward.1} parent=1 // pred_check
      _
    $region3: #{base_network_forward.1} parent=1 // pred_check_branch
      %12 = sbr.rel (0) target = $region5
    $region4: #{base_network_forward.1} parent=1 // pred_region
      _
    $region5: #{base_network_forward.1} parent=1 // pred_fallthru
      _
    // Predicated region
    $region6: #{base_network_forward.1} parent=1 // pred_check
      _
    $region7: #{base_network_forward.1} parent=1 // pred_check_branch
      %14 = sbr.rel (0) target = $region9
    $region8: #{base_network_forward.1} parent=1 // pred_region
      %s16 = ssub.s32 4096, 4096
      %17 = vsyncadd [#allocation5], %s16
      %s18 = sshll.u32 [#allocation4], 4
      %s19 = int_to_ptr.vmem [resolvable:$true] %s18
      %24 = dma.hbm_to_vmem [thread:$0]  %s1, 4096, %s19, [#allocation5], 512, 512, 32
    $region9: #{base_network_forward.1} parent=1 // pred_fallthru
      _
    // Predicated region
    $region10: #{base_network_forward.1} parent=1 // pred_check
      _
    $region11: #{base_network_forward.1} parent=1 // pred_check_branch
      %26 = sbr.rel (0) target = $region13
    $region12: #{base_network_forward.1} parent=1 // pred_region
      _
    $region13: #{base_network_forward.1} parent=1 // pred_fallthru
      _
    // Predicated region
    $region14: #{base_network_forward.1} parent=1 // pred_check
      _
    $region15: #{base_network_forward.1} parent=1 // pred_check_branch
      %28 = sbr.rel (0) target = $region17
    $region16: #{base_network_forward.1} parent=1 // pred_region
      %29 = dma.done [#allocation5], 4096
    $region17: #{base_network_forward.1} parent=1 // pred_fallthru
      _
    %s32 = sshll.u32 1, 14
    %s33 = sxor.u32 4294967295, %s32
    %s35 = sld [smem:[#allocation0]]
    %s36 = sadd.s32 2, %s35
    %s38 = sshll.u32 7, 26
    %s39 = sxor.u32 4294967295, %s38
    %s40 = sand.u32 0, %s39
    %s41 = sshll.u32 %s36, 26
    %s42 = sor.u32 %s40, %s41
    %s43 = sshll.u32 [#allocation2], 4
    %s44 = int_to_ptr.vmem [resolvable:$true] %s43
    %47 = sst [smem:[#allocation9]] 1024
    %s48 = scalar_lea.smem [#allocation9], 1
    %49 = sst [smem:[%s48]] 1024
    %s50 = scalar_lea.smem [#allocation9], 2
    %51 = sst [smem:[%s50]] 8
    %s52 = scalar_lea.smem [#allocation9], 3
    %53 = sst [smem:[%s52]] 64
    %s54 = scalar_lea.smem [#allocation9], 4
    %55 = sst [smem:[%s54]] 128
    %s56 = scalar_lea.smem [#allocation9], 5
    %57 = sst [smem:[%s56]] 2
    %s58 = scalar_lea.smem [#allocation9], 6
    %59 = sst [smem:[%s58]] 512
    %s60 = scalar_lea.smem [#allocation9], 7
    %61 = sst [smem:[%s60]] 64
    %s62 = scalar_lea.smem [#allocation9], 8
    %63 = sst [smem:[%s62]] 4
    %65 = dma.general %s2, 16384, %s44, [#allocation3], [#allocation8], [#allocation9], %s42, 0
    %v66 = vld [vmem:[%s0] sm:$0xf]
    %v67 = vld [vmem:[%s0 + $0x4] sm:$0xf]
    %v68 = vld [vmem:[#allocation4] sm:$0xff]
    %v69 = vld [vmem:[#allocation4 + $0x8] sm:$0xff]
    %v70 = vld [vmem:[#allocation4 + $0x10] sm:$0xff]
    %v71 = vld [vmem:[#allocation4 + $0x18] sm:$0xff]
    %v72 = vld [vmem:[#allocation4 + $0x20] sm:$0xff]
    %v73 = vld [vmem:[#allocation4 + $0x28] sm:$0xff]
    %v74 = vld [vmem:[#allocation4 + $0x30] sm:$0xff]
    %v75 = vld [vmem:[#allocation4 + $0x38] sm:$0xff]
    %v76 = vld [vmem:[#allocation4 + $0x40] sm:$0xff]
    %v77 = vld [vmem:[#allocation4 + $0x48] sm:$0xff]
    %v78 = vld [vmem:[#allocation4 + $0x50] sm:$0xff]
    %v79 = vld [vmem:[#allocation4 + $0x58] sm:$0xff]
    %v80 = vld [vmem:[#allocation4 + $0x60] sm:$0xff]
    %v81 = vld [vmem:[#allocation4 + $0x68] sm:$0xff]
    %v82 = vld [vmem:[#allocation4 + $0x70] sm:$0xff]
    %v83 = vld [vmem:[#allocation4 + $0x78] sm:$0xff]
    %v84 = vld [vmem:[#allocation4 + $0x80] sm:$0xff]
    %v85 = vld [vmem:[#allocation4 + $0x88] sm:$0xff]
    %v86 = vld [vmem:[#allocation4 + $0x90] sm:$0xff]
    %v87 = vld [vmem:[#allocation4 + $0x98] sm:$0xff]
    %v88 = vld [vmem:[#allocation4 + $0xa0] sm:$0xff]
    %v89 = vld [vmem:[#allocation4 + $0xa8] sm:$0xff]
    %v90 = vld [vmem:[#allocation4 + $0xb0] sm:$0xff]
    %v91 = vld [vmem:[#allocation4 + $0xb8] sm:$0xff]
    %v92 = vld [vmem:[#allocation4 + $0xc0] sm:$0xff]
    %v93 = vld [vmem:[#allocation4 + $0xc8] sm:$0xff]
    %v94 = vld [vmem:[#allocation4 + $0xd0] sm:$0xff]
    %v95 = vld [vmem:[#allocation4 + $0xd8] sm:$0xff]
    %v96 = vld [vmem:[#allocation4 + $0xe0] sm:$0xff]
    %v97 = vld [vmem:[#allocation4 + $0xe8] sm:$0xff]
    %v98 = vld [vmem:[#allocation4 + $0xf0] sm:$0xff]
    %v99 = vld [vmem:[#allocation4 + $0xf8] sm:$0xff]
    %v100 = vld [vmem:[%s3] sm:$0xff]
    %v102 = vlaneseq
    %v103 = vshrl.u32 %v102, 7
    %v104 = vsub.s32 0, %v103
    %v105 = vrot.slane %v100, %v104
    %v106 = vlaneseq
    %v107 = vshrl.u32 %v106, 7
    %v108 = vsub.s32 1, %v107
    %v109 = vrot.slane %v100, %v108
    %v110 = vlaneseq
    %v111 = vshrl.u32 %v110, 7
    %v112 = vsub.s32 2, %v111
    %v113 = vrot.slane %v100, %v112
    %v114 = vlaneseq
    %v115 = vshrl.u32 %v114, 7
    %v116 = vsub.s32 3, %v115
    %v117 = vrot.slane %v100, %v116
    %v118 = vlaneseq
    %v119 = vshrl.u32 %v118, 7
    %v120 = vsub.s32 4, %v119
    %v121 = vrot.slane %v100, %v120
    %v122 = vlaneseq
    %v123 = vshrl.u32 %v122, 7
    %v124 = vsub.s32 5, %v123
    %v125 = vrot.slane %v100, %v124
    %v126 = vlaneseq
    %v127 = vshrl.u32 %v126, 7
    %v128 = vsub.s32 6, %v127
    %v129 = vrot.slane %v100, %v128
    %v130 = vlaneseq
    %v131 = vshrl.u32 %v130, 7
    %v132 = vsub.s32 7, %v131
    %v133 = vrot.slane %v100, %v132
    %v144 = vunpack.c.l.b16 %v66
    %v145 = vunpack.c.l.b16 %v67
    %v146 = vpack.c.b16 %v145, %v144
    %v179 = vunpack.c.l.b16 %v68
    %v180 = vunpack.c.h.b16 %v68
    %v181 = vunpack.c.l.b16 %v69
    %v182 = vunpack.c.h.b16 %v69
    %v183 = vunpack.c.l.b16 %v70
    %v184 = vunpack.c.h.b16 %v70
    %v185 = vunpack.c.l.b16 %v71
    %v186 = vunpack.c.h.b16 %v71
    %v187 = vunpack.c.l.b16 %v72
    %v188 = vunpack.c.h.b16 %v72
    %v189 = vunpack.c.l.b16 %v73
    %v190 = vunpack.c.h.b16 %v73
    %v191 = vunpack.c.l.b16 %v74
    %v192 = vunpack.c.h.b16 %v74
    %v193 = vunpack.c.l.b16 %v75
    %v194 = vunpack.c.h.b16 %v75
    %v195 = vunpack.c.l.b16 %v76
    %v196 = vunpack.c.h.b16 %v76
    %v197 = vunpack.c.l.b16 %v77
    %v198 = vunpack.c.h.b16 %v77
    %v199 = vunpack.c.l.b16 %v78
    %v200 = vunpack.c.h.b16 %v78
    %v201 = vunpack.c.l.b16 %v79
    %v202 = vunpack.c.h.b16 %v79
    %v203 = vunpack.c.l.b16 %v80
    %v204 = vunpack.c.h.b16 %v80
    %v205 = vunpack.c.l.b16 %v81
    %v206 = vunpack.c.h.b16 %v81
    %v207 = vunpack.c.l.b16 %v82
    %v208 = vunpack.c.h.b16 %v82
    %v209 = vunpack.c.l.b16 %v83
    %v210 = vunpack.c.h.b16 %v83
    %v211 = vunpack.c.l.b16 %v84
    %v212 = vunpack.c.h.b16 %v84
    %v213 = vunpack.c.l.b16 %v85
    %v214 = vunpack.c.h.b16 %v85
    %v215 = vunpack.c.l.b16 %v86
    %v216 = vunpack.c.h.b16 %v86
    %v217 = vunpack.c.l.b16 %v87
    %v218 = vunpack.c.h.b16 %v87
    %v219 = vunpack.c.l.b16 %v88
    %v220 = vunpack.c.h.b16 %v88
    %v221 = vunpack.c.l.b16 %v89
    %v222 = vunpack.c.h.b16 %v89
    %v223 = vunpack.c.l.b16 %v90
    %v224 = vunpack.c.h.b16 %v90
    %v225 = vunpack.c.l.b16 %v91
    %v226 = vunpack.c.h.b16 %v91
    %v227 = vunpack.c.l.b16 %v92
    %v228 = vunpack.c.h.b16 %v92
    %v229 = vunpack.c.l.b16 %v93
    %v230 = vunpack.c.h.b16 %v93
    %v231 = vunpack.c.l.b16 %v94
    %v232 = vunpack.c.h.b16 %v94
    %v233 = vunpack.c.l.b16 %v95
    %v234 = vunpack.c.h.b16 %v95
    %v235 = vunpack.c.l.b16 %v96
    %v236 = vunpack.c.h.b16 %v96
    %v237 = vunpack.c.l.b16 %v97
    %v238 = vunpack.c.h.b16 %v97
    %v239 = vunpack.c.l.b16 %v98
    %v240 = vunpack.c.h.b16 %v98
    %v241 = vunpack.c.l.b16 %v99
    %v242 = vunpack.c.h.b16 %v99
    %v243 = vpack.c.b16 %v187, %v179
    %v244 = vpack.c.b16 %v188, %v180
    %v245 = vpack.c.b16 %v189, %v181
    %v246 = vpack.c.b16 %v190, %v182
    %v247 = vpack.c.b16 %v191, %v183
    %v248 = vpack.c.b16 %v192, %v184
    %v249 = vpack.c.b16 %v193, %v185
    %v250 = vpack.c.b16 %v194, %v186
    %v251 = vpack.c.b16 %v203, %v195
    %v252 = vpack.c.b16 %v204, %v196
    %v253 = vpack.c.b16 %v205, %v197
    %v254 = vpack.c.b16 %v206, %v198
    %v255 = vpack.c.b16 %v207, %v199
    %v256 = vpack.c.b16 %v208, %v200
    %v257 = vpack.c.b16 %v209, %v201
    %v258 = vpack.c.b16 %v210, %v202
    %v259 = vpack.c.b16 %v219, %v211
    %v260 = vpack.c.b16 %v220, %v212
    %v261 = vpack.c.b16 %v221, %v213
    %v262 = vpack.c.b16 %v222, %v214
    %v263 = vpack.c.b16 %v223, %v215
    %v264 = vpack.c.b16 %v224, %v216
    %v265 = vpack.c.b16 %v225, %v217
    %v266 = vpack.c.b16 %v226, %v218
    %v267 = vpack.c.b16 %v235, %v227
    %v268 = vpack.c.b16 %v236, %v228
    %v269 = vpack.c.b16 %v237, %v229
    %v270 = vpack.c.b16 %v238, %v230
    %v271 = vpack.c.b16 %v239, %v231
    %v272 = vpack.c.b16 %v240, %v232
    %v273 = vpack.c.b16 %v241, %v233
    %v274 = vpack.c.b16 %v242, %v234
    %vm307 = vcmask 523264
    %v309 = vsel %vm307, %v146, 0
    %311 = vmatprep.subr.bf16.mxu0 %v244
    %312 = vmatpush1.bf16.msra.mxu0 %v243
    %313 = vmatprep.subr.bf16.mxu0 %v252
    %314 = vmatpush1.bf16.msra.mxu0 %v251
    %315 = vmatprep.subr.bf16.mxu0 %v260
    %316 = vmatpush1.bf16.msra.mxu0 %v259
    %317 = vmatprep.subr.bf16.mxu0 %v268
    %318 = vmatpush1.bf16.msra.mxu0 %v267
    %319 = vmatprep.subr.bf16.mxu0 0
    %320 = vmatpush1.bf16.msra.mxu0 0
    %321 = vmatprep.subr.bf16.mxu0 0
    %322 = vmatpush1.bf16.msra.mxu0 0
    %323 = vmatprep.subr.bf16.mxu0 0
    %324 = vmatpush1.bf16.msra.mxu0 0
    %325 = vmatprep.subr.bf16.mxu0 0
    %326 = vmatpush1.bf16.msra.mxu0 0
    %327 = vmatprep.subr.bf16.mxu0 0
    %328 = vmatpush1.bf16.msra.mxu0 0
    %329 = vmatprep.subr.bf16.mxu0 0
    %330 = vmatpush1.bf16.msra.mxu0 0
    %331 = vmatprep.subr.bf16.mxu0 0
    %332 = vmatpush1.bf16.msra.mxu0 0
    %333 = vmatprep.subr.bf16.mxu0 0
    %334 = vmatpush1.bf16.msra.mxu0 0
    %335 = vmatprep.subr.bf16.mxu0 0
    %336 = vmatpush1.bf16.msra.mxu0 0
    %337 = vmatprep.subr.bf16.mxu0 0
    %338 = vmatpush1.bf16.msra.mxu0 0
    %339 = vmatprep.subr.bf16.mxu0 0
    %340 = vmatpush1.bf16.msra.mxu0 0
    %341 = vmatprep.subr.bf16.mxu0 0
    %342 = vmatpush1.bf16.msra.mxu0 0
    %343 = vmatprep.mubr.bf16.mxu0 0
    %344 = vmatmul.mubr.bf16.gmra.mrb[0].mxu0 %v309
    %v345 = vpop.f32.mrb[0].mxu0
    %v346 = vadd.f32 %v105, %v345
    %v347 = vpop.f32.mrb[0].mxu0
    %v348 = vadd.f32 %v109, %v347
    %v349 = vpop.f32.mrb[0].mxu0
    %v350 = vadd.f32 %v105, %v349
    %v351 = vpop.f32.mrb[0].mxu0
    %v352 = vadd.f32 %v109, %v351
    %353 = vdwg.mxu0
    %354 = vmatprep.subr.bf16.mxu0 %v246
    %355 = vmatpush1.bf16.msra.mxu0 %v245
    %356 = vmatprep.subr.bf16.mxu0 %v254
    %357 = vmatpush1.bf16.msra.mxu0 %v253
    %358 = vmatprep.subr.bf16.mxu0 %v262
    %359 = vmatpush1.bf16.msra.mxu0 %v261
    %360 = vmatprep.subr.bf16.mxu0 %v270
    %361 = vmatpush1.bf16.msra.mxu0 %v269
    %362 = vmatprep.subr.bf16.mxu0 0
    %363 = vmatpush1.bf16.msra.mxu0 0
    %364 = vmatprep.subr.bf16.mxu0 0
    %365 = vmatpush1.bf16.msra.mxu0 0
    %366 = vmatprep.subr.bf16.mxu0 0
    %367 = vmatpush1.bf16.msra.mxu0 0
    %368 = vmatprep.subr.bf16.mxu0 0
    %369 = vmatpush1.bf16.msra.mxu0 0
    %370 = vmatprep.subr.bf16.mxu0 0
    %371 = vmatpush1.bf16.msra.mxu0 0
    %372 = vmatprep.subr.bf16.mxu0 0
    %373 = vmatpush1.bf16.msra.mxu0 0
    %374 = vmatprep.subr.bf16.mxu0 0
    %375 = vmatpush1.bf16.msra.mxu0 0
    %376 = vmatprep.subr.bf16.mxu0 0
    %377 = vmatpush1.bf16.msra.mxu0 0
    %378 = vmatprep.subr.bf16.mxu0 0
    %379 = vmatpush1.bf16.msra.mxu0 0
    %380 = vmatprep.subr.bf16.mxu0 0
    %381 = vmatpush1.bf16.msra.mxu0 0
    %382 = vmatprep.subr.bf16.mxu0 0
    %383 = vmatpush1.bf16.msra.mxu0 0
    %384 = vmatprep.subr.bf16.mxu0 0
    %385 = vmatpush1.bf16.msra.mxu0 0
    %386 = vmatprep.mubr.bf16.mxu0 0
    %387 = vmatmul.mubr.bf16.gmra.mrb[0].mxu0 %v309
    %v388 = vpop.f32.mrb[0].mxu0
    %v389 = vadd.f32 %v113, %v388
    %v390 = vpop.f32.mrb[0].mxu0
    %v391 = vadd.f32 %v117, %v390
    %v392 = vpop.f32.mrb[0].mxu0
    %v393 = vadd.f32 %v113, %v392
    %v394 = vpop.f32.mrb[0].mxu0
    %v395 = vadd.f32 %v117, %v394
    %396 = vdwg.mxu0
    %397 = vmatprep.subr.bf16.mxu0 %v248
    %398 = vmatpush1.bf16.msra.mxu0 %v247
    %399 = vmatprep.subr.bf16.mxu0 %v256
    %400 = vmatpush1.bf16.msra.mxu0 %v255
    %401 = vmatprep.subr.bf16.mxu0 %v264
    %402 = vmatpush1.bf16.msra.mxu0 %v263
    %403 = vmatprep.subr.bf16.mxu0 %v272
    %404 = vmatpush1.bf16.msra.mxu0 %v271
    %405 = vmatprep.subr.bf16.mxu0 0
    %406 = vmatpush1.bf16.msra.mxu0 0
    %407 = vmatprep.subr.bf16.mxu0 0
    %408 = vmatpush1.bf16.msra.mxu0 0
    %409 = vmatprep.subr.bf16.mxu0 0
    %410 = vmatpush1.bf16.msra.mxu0 0
    %411 = vmatprep.subr.bf16.mxu0 0
    %412 = vmatpush1.bf16.msra.mxu0 0
    %413 = vmatprep.subr.bf16.mxu0 0
    %414 = vmatpush1.bf16.msra.mxu0 0
    %415 = vmatprep.subr.bf16.mxu0 0
    %416 = vmatpush1.bf16.msra.mxu0 0
    %417 = vmatprep.subr.bf16.mxu0 0
    %418 = vmatpush1.bf16.msra.mxu0 0
    %419 = vmatprep.subr.bf16.mxu0 0
    %420 = vmatpush1.bf16.msra.mxu0 0
    %421 = vmatprep.subr.bf16.mxu0 0
    %422 = vmatpush1.bf16.msra.mxu0 0
    %423 = vmatprep.subr.bf16.mxu0 0
    %424 = vmatpush1.bf16.msra.mxu0 0
    %425 = vmatprep.subr.bf16.mxu0 0
    %426 = vmatpush1.bf16.msra.mxu0 0
    %427 = vmatprep.subr.bf16.mxu0 0
    %428 = vmatpush1.bf16.msra.mxu0 0
    %429 = vmatprep.mubr.bf16.mxu0 0
    %430 = vmatmul.mubr.bf16.gmra.mrb[0].mxu0 %v309
    %v431 = vpop.f32.mrb[0].mxu0
    %v432 = vadd.f32 %v121, %v431
    %v433 = vpop.f32.mrb[0].mxu0
    %v434 = vadd.f32 %v125, %v433
    %v435 = vpop.f32.mrb[0].mxu0
    %v436 = vadd.f32 %v121, %v435
    %v437 = vpop.f32.mrb[0].mxu0
    %v438 = vadd.f32 %v125, %v437
    %439 = vdwg.mxu0
    %440 = vmatprep.subr.bf16.mxu0 %v250
    %441 = vmatpush1.bf16.msra.mxu0 %v249
    %442 = vmatprep.subr.bf16.mxu0 %v258
    %443 = vmatpush1.bf16.msra.mxu0 %v257
    %444 = vmatprep.subr.bf16.mxu0 %v266
    %445 = vmatpush1.bf16.msra.mxu0 %v265
    %446 = vmatprep.subr.bf16.mxu0 %v274
    %447 = vmatpush1.bf16.msra.mxu0 %v273
    %448 = vmatprep.subr.bf16.mxu0 0
    %449 = vmatpush1.bf16.msra.mxu0 0
    %450 = vmatprep.subr.bf16.mxu0 0
    %451 = vmatpush1.bf16.msra.mxu0 0
    %452 = vmatprep.subr.bf16.mxu0 0
    %453 = vmatpush1.bf16.msra.mxu0 0
    %454 = vmatprep.subr.bf16.mxu0 0
    %455 = vmatpush1.bf16.msra.mxu0 0
    %456 = vmatprep.subr.bf16.mxu0 0
    %457 = vmatpush1.bf16.msra.mxu0 0
    %458 = vmatprep.subr.bf16.mxu0 0
    %459 = vmatpush1.bf16.msra.mxu0 0
    %460 = vmatprep.subr.bf16.mxu0 0
    %461 = vmatpush1.bf16.msra.mxu0 0
    %462 = vmatprep.subr.bf16.mxu0 0
    %463 = vmatpush1.bf16.msra.mxu0 0
    %464 = vmatprep.subr.bf16.mxu0 0
    %465 = vmatpush1.bf16.msra.mxu0 0
    %466 = vmatprep.subr.bf16.mxu0 0
    %467 = vmatpush1.bf16.msra.mxu0 0
    %468 = vmatprep.subr.bf16.mxu0 0
    %469 = vmatpush1.bf16.msra.mxu0 0
    %470 = vmatprep.subr.bf16.mxu0 0
    %471 = vmatpush1.bf16.msra.mxu0 0
    %472 = vmatprep.mubr.bf16.mxu0 0
    %473 = vmatmul.mubr.bf16.gmra.mrb[0].mxu0 %v309
    %v474 = vpop.f32.mrb[0].mxu0
    %v475 = vadd.f32 %v129, %v474
    %v476 = vpop.f32.mrb[0].mxu0
    %v477 = vadd.f32 %v133, %v476
    %v478 = vpop.f32.mrb[0].mxu0
    %v479 = vadd.f32 %v129, %v478
    %v480 = vpop.f32.mrb[0].mxu0
    %v481 = vadd.f32 %v133, %v480
    %482 = vdwg.mxu0
    %s483 = smul.u32 4, 32
    %s484 = smul.u32 %s483, 8
    %s485 = sshll.u32 %s484, 4
    %486 = dma.done [#allocation3], %s485
    %v487 = vld [vmem:[#allocation2] sm:$0xff]
    %v488 = vld [vmem:[#allocation2 + $0x8] sm:$0xff]
    %v489 = vld [vmem:[#allocation2 + $0x10] sm:$0xff]
    %v490 = vld [vmem:[#allocation2 + $0x18] sm:$0xff]
    %v491 = vld [vmem:[#allocation2 + $0x20] sm:$0xff]
    %v492 = vld [vmem:[#allocation2 + $0x28] sm:$0xff]
    %v493 = vld [vmem:[#allocation2 + $0x30] sm:$0xff]
    %v494 = vld [vmem:[#allocation2 + $0x38] sm:$0xff]
    %v495 = vld [vmem:[#allocation2 + $0x40] sm:$0xff]
    %v496 = vld [vmem:[#allocation2 + $0x48] sm:$0xff]
    %v497 = vld [vmem:[#allocation2 + $0x50] sm:$0xff]
    %v498 = vld [vmem:[#allocation2 + $0x58] sm:$0xff]
    %v499 = vld [vmem:[#allocation2 + $0x60] sm:$0xff]
    %v500 = vld [vmem:[#allocation2 + $0x68] sm:$0xff]
    %v501 = vld [vmem:[#allocation2 + $0x70] sm:$0xff]
    %v502 = vld [vmem:[#allocation2 + $0x78] sm:$0xff]
    %v503 = vld [vmem:[#allocation2 + $0x80] sm:$0xff]
    %v504 = vld [vmem:[#allocation2 + $0x88] sm:$0xff]
    %v505 = vld [vmem:[#allocation2 + $0x90] sm:$0xff]
    %v506 = vld [vmem:[#allocation2 + $0x98] sm:$0xff]
    %v507 = vld [vmem:[#allocation2 + $0xa0] sm:$0xff]
    %v508 = vld [vmem:[#allocation2 + $0xa8] sm:$0xff]
    %v509 = vld [vmem:[#allocation2 + $0xb0] sm:$0xff]
    %v510 = vld [vmem:[#allocation2 + $0xb8] sm:$0xff]
    %v511 = vld [vmem:[#allocation2 + $0xc0] sm:$0xff]
    %v512 = vld [vmem:[#allocation2 + $0xc8] sm:$0xff]
    %v513 = vld [vmem:[#allocation2 + $0xd0] sm:$0xff]
    %v514 = vld [vmem:[#allocation2 + $0xd8] sm:$0xff]
    %v515 = vld [vmem:[#allocation2 + $0xe0] sm:$0xff]
    %v516 = vld [vmem:[#allocation2 + $0xe8] sm:$0xff]
    %v517 = vld [vmem:[#allocation2 + $0xf0] sm:$0xff]
    %v518 = vld [vmem:[#allocation2 + $0xf8] sm:$0xff]
    %v519 = vld [vmem:[#allocation2 + $0x100] sm:$0xff]
    %v520 = vld [vmem:[#allocation2 + $0x108] sm:$0xff]
    %v521 = vld [vmem:[#allocation2 + $0x110] sm:$0xff]
    %v522 = vld [vmem:[#allocation2 + $0x118] sm:$0xff]
    %v523 = vld [vmem:[#allocation2 + $0x120] sm:$0xff]
    %v524 = vld [vmem:[#allocation2 + $0x128] sm:$0xff]
    %v525 = vld [vmem:[#allocation2 + $0x130] sm:$0xff]
    %v526 = vld [vmem:[#allocation2 + $0x138] sm:$0xff]
    %v527 = vld [vmem:[#allocation2 + $0x140] sm:$0xff]
    %v528 = vld [vmem:[#allocation2 + $0x148] sm:$0xff]
    %v529 = vld [vmem:[#allocation2 + $0x150] sm:$0xff]
    %v530 = vld [vmem:[#allocation2 + $0x158] sm:$0xff]
    %v531 = vld [vmem:[#allocation2 + $0x160] sm:$0xff]
    %v532 = vld [vmem:[#allocation2 + $0x168] sm:$0xff]
    %v533 = vld [vmem:[#allocation2 + $0x170] sm:$0xff]
    %v534 = vld [vmem:[#allocation2 + $0x178] sm:$0xff]
    %v535 = vld [vmem:[#allocation2 + $0x180] sm:$0xff]
    %v536 = vld [vmem:[#allocation2 + $0x188] sm:$0xff]
    %v537 = vld [vmem:[#allocation2 + $0x190] sm:$0xff]
    %v538 = vld [vmem:[#allocation2 + $0x198] sm:$0xff]
    %v539 = vld [vmem:[#allocation2 + $0x1a0] sm:$0xff]
    %v540 = vld [vmem:[#allocation2 + $0x1a8] sm:$0xff]
    %v541 = vld [vmem:[#allocation2 + $0x1b0] sm:$0xff]
    %v542 = vld [vmem:[#allocation2 + $0x1b8] sm:$0xff]
    %v543 = vld [vmem:[#allocation2 + $0x1c0] sm:$0xff]
    %v544 = vld [vmem:[#allocation2 + $0x1c8] sm:$0xff]
    %v545 = vld [vmem:[#allocation2 + $0x1d0] sm:$0xff]
    %v546 = vld [vmem:[#allocation2 + $0x1d8] sm:$0xff]
    %v547 = vld [vmem:[#allocation2 + $0x1e0] sm:$0xff]
    %v548 = vld [vmem:[#allocation2 + $0x1e8] sm:$0xff]
    %v549 = vld [vmem:[#allocation2 + $0x1f0] sm:$0xff]
    %v550 = vld [vmem:[#allocation2 + $0x1f8] sm:$0xff]
    %v551 = vld [vmem:[#allocation2 + $0x200] sm:$0xff]
    %v552 = vld [vmem:[#allocation2 + $0x208] sm:$0xff]
    %v553 = vld [vmem:[#allocation2 + $0x210] sm:$0xff]
    %v554 = vld [vmem:[#allocation2 + $0x218] sm:$0xff]
    %v555 = vld [vmem:[#allocation2 + $0x220] sm:$0xff]
    %v556 = vld [vmem:[#allocation2 + $0x228] sm:$0xff]
    %v557 = vld [vmem:[#allocation2 + $0x230] sm:$0xff]
    %v558 = vld [vmem:[#allocation2 + $0x238] sm:$0xff]
    %v559 = vld [vmem:[#allocation2 + $0x240] sm:$0xff]
    %v560 = vld [vmem:[#allocation2 + $0x248] sm:$0xff]
    %v561 = vld [vmem:[#allocation2 + $0x250] sm:$0xff]
    %v562 = vld [vmem:[#allocation2 + $0x258] sm:$0xff]
    %v563 = vld [vmem:[#allocation2 + $0x260] sm:$0xff]
    %v564 = vld [vmem:[#allocation2 + $0x268] sm:$0xff]
    %v565 = vld [vmem:[#allocation2 + $0x270] sm:$0xff]
    %v566 = vld [vmem:[#allocation2 + $0x278] sm:$0xff]
    %v567 = vld [vmem:[#allocation2 + $0x280] sm:$0xff]
    %v568 = vld [vmem:[#allocation2 + $0x288] sm:$0xff]
    %v569 = vld [vmem:[#allocation2 + $0x290] sm:$0xff]
    %v570 = vld [vmem:[#allocation2 + $0x298] sm:$0xff]
    %v571 = vld [vmem:[#allocation2 + $0x2a0] sm:$0xff]
    %v572 = vld [vmem:[#allocation2 + $0x2a8] sm:$0xff]
    %v573 = vld [vmem:[#allocation2 + $0x2b0] sm:$0xff]
    %v574 = vld [vmem:[#allocation2 + $0x2b8] sm:$0xff]
    %v575 = vld [vmem:[#allocation2 + $0x2c0] sm:$0xff]
    %v576 = vld [vmem:[#allocation2 + $0x2c8] sm:$0xff]
    %v577 = vld [vmem:[#allocation2 + $0x2d0] sm:$0xff]
    %v578 = vld [vmem:[#allocation2 + $0x2d8] sm:$0xff]
    %v579 = vld [vmem:[#allocation2 + $0x2e0] sm:$0xff]
    %v580 = vld [vmem:[#allocation2 + $0x2e8] sm:$0xff]
    %v581 = vld [vmem:[#allocation2 + $0x2f0] sm:$0xff]
    %v582 = vld [vmem:[#allocation2 + $0x2f8] sm:$0xff]
    %v583 = vld [vmem:[#allocation2 + $0x300] sm:$0xff]
    %v584 = vld [vmem:[#allocation2 + $0x308] sm:$0xff]
    %v585 = vld [vmem:[#allocation2 + $0x310] sm:$0xff]
    %v586 = vld [vmem:[#allocation2 + $0x318] sm:$0xff]
    %v587 = vld [vmem:[#allocation2 + $0x320] sm:$0xff]
    %v588 = vld [vmem:[#allocation2 + $0x328] sm:$0xff]
    %v589 = vld [vmem:[#allocation2 + $0x330] sm:$0xff]
    %v590 = vld [vmem:[#allocation2 + $0x338] sm:$0xff]
    %v591 = vld [vmem:[#allocation2 + $0x340] sm:$0xff]
    %v592 = vld [vmem:[#allocation2 + $0x348] sm:$0xff]
    %v593 = vld [vmem:[#allocation2 + $0x350] sm:$0xff]
    %v594 = vld [vmem:[#allocation2 + $0x358] sm:$0xff]
    %v595 = vld [vmem:[#allocation2 + $0x360] sm:$0xff]
    %v596 = vld [vmem:[#allocation2 + $0x368] sm:$0xff]
    %v597 = vld [vmem:[#allocation2 + $0x370] sm:$0xff]
    %v598 = vld [vmem:[#allocation2 + $0x378] sm:$0xff]
    %v599 = vld [vmem:[#allocation2 + $0x380] sm:$0xff]
    %v600 = vld [vmem:[#allocation2 + $0x388] sm:$0xff]
    %v601 = vld [vmem:[#allocation2 + $0x390] sm:$0xff]
    %v602 = vld [vmem:[#allocation2 + $0x398] sm:$0xff]
    %v603 = vld [vmem:[#allocation2 + $0x3a0] sm:$0xff]
    %v604 = vld [vmem:[#allocation2 + $0x3a8] sm:$0xff]
    %v605 = vld [vmem:[#allocation2 + $0x3b0] sm:$0xff]
    %v606 = vld [vmem:[#allocation2 + $0x3b8] sm:$0xff]
    %v607 = vld [vmem:[#allocation2 + $0x3c0] sm:$0xff]
    %v608 = vld [vmem:[#allocation2 + $0x3c8] sm:$0xff]
    %v609 = vld [vmem:[#allocation2 + $0x3d0] sm:$0xff]
    %v610 = vld [vmem:[#allocation2 + $0x3d8] sm:$0xff]
    %v611 = vld [vmem:[#allocation2 + $0x3e0] sm:$0xff]
    %v612 = vld [vmem:[#allocation2 + $0x3e8] sm:$0xff]
    %v613 = vld [vmem:[#allocation2 + $0x3f0] sm:$0xff]
    %v614 = vld [vmem:[#allocation2 + $0x3f8] sm:$0xff]
    %615 = vmatprep.subr.bf16.mxu0 %v488
    %616 = vmatpush1.bf16.msra.mxu0 %v487
    %617 = vmatprep.subr.bf16.mxu0 %v496
    %618 = vmatpush1.bf16.msra.mxu0 %v495
    %619 = vmatprep.subr.bf16.mxu0 %v504
    %620 = vmatpush1.bf16.msra.mxu0 %v503
    %621 = vmatprep.subr.bf16.mxu0 %v512
    %622 = vmatpush1.bf16.msra.mxu0 %v511
    %623 = vmatprep.subr.bf16.mxu0 %v520
    %624 = vmatpush1.bf16.msra.mxu0 %v519
    %625 = vmatprep.subr.bf16.mxu0 %v528
    %626 = vmatpush1.bf16.msra.mxu0 %v527
    %627 = vmatprep.subr.bf16.mxu0 %v536
    %628 = vmatpush1.bf16.msra.mxu0 %v535
    %629 = vmatprep.subr.bf16.mxu0 %v544
    %630 = vmatpush1.bf16.msra.mxu0 %v543
    %631 = vmatprep.subr.bf16.mxu0 %v552
    %632 = vmatpush1.bf16.msra.mxu0 %v551
    %633 = vmatprep.subr.bf16.mxu0 %v560
    %634 = vmatpush1.bf16.msra.mxu0 %v559
    %635 = vmatprep.subr.bf16.mxu0 %v568
    %636 = vmatpush1.bf16.msra.mxu0 %v567
    %637 = vmatprep.subr.bf16.mxu0 %v576
    %638 = vmatpush1.bf16.msra.mxu0 %v575
    %639 = vmatprep.subr.bf16.mxu0 %v584
    %640 = vmatpush1.bf16.msra.mxu0 %v583
    %641 = vmatprep.subr.bf16.mxu0 %v592
    %642 = vmatpush1.bf16.msra.mxu0 %v591
    %643 = vmatprep.subr.bf16.mxu0 %v600
    %644 = vmatpush1.bf16.msra.mxu0 %v599
    %645 = vmatprep.subr.bf16.mxu0 %v608
    %646 = vmatpush1.bf16.msra.mxu0 %v607
    %647 = vmatprep.mubr.bf16.mxu0 0
    %648 = vmatmul.mubr.bf16.gmra.mrb[0].mxu0 0
    %v649 = vpop.f32.mrb[0].mxu0
    %v650 = vadd.f32 0.0, %v649
    %v651 = vpop.f32.mrb[0].mxu0
    %v652 = vadd.f32 0.0, %v651
    %v653 = vpop.f32.mrb[0].mxu0
    %v654 = vpop.f32.mrb[0].mxu0
    %655 = vdwg.mxu0
    %656 = vmatprep.subr.bf16.mxu0 %v490
    %657 = vmatpush1.bf16.msra.mxu0 %v489
    %658 = vmatprep.subr.bf16.mxu0 %v498
    %659 = vmatpush1.bf16.msra.mxu0 %v497
    %660 = vmatprep.subr.bf16.mxu0 %v506
    %661 = vmatpush1.bf16.msra.mxu0 %v505
    %662 = vmatprep.subr.bf16.mxu0 %v514
    %663 = vmatpush1.bf16.msra.mxu0 %v513
    %664 = vmatprep.subr.bf16.mxu0 %v522
    %665 = vmatpush1.bf16.msra.mxu0 %v521
    %666 = vmatprep.subr.bf16.mxu0 %v530
    %667 = vmatpush1.bf16.msra.mxu0 %v529
    %668 = vmatprep.subr.bf16.mxu0 %v538
    %669 = vmatpush1.bf16.msra.mxu0 %v537
    %670 = vmatprep.subr.bf16.mxu0 %v546
    %671 = vmatpush1.bf16.msra.mxu0 %v545
    %672 = vmatprep.subr.bf16.mxu0 %v554
    %673 = vmatpush1.bf16.msra.mxu0 %v553
    %674 = vmatprep.subr.bf16.mxu0 %v562
    %675 = vmatpush1.bf16.msra.mxu0 %v561
    %676 = vmatprep.subr.bf16.mxu0 %v570
    %677 = vmatpush1.bf16.msra.mxu0 %v569
    %678 = vmatprep.subr.bf16.mxu0 %v578
    %679 = vmatpush1.bf16.msra.mxu0 %v577
    %680 = vmatprep.subr.bf16.mxu0 %v586
    %681 = vmatpush1.bf16.msra.mxu0 %v585
    %682 = vmatprep.subr.bf16.mxu0 %v594
    %683 = vmatpush1.bf16.msra.mxu0 %v593
    %684 = vmatprep.subr.bf16.mxu0 %v602
    %685 = vmatpush1.bf16.msra.mxu0 %v601
    %686 = vmatprep.subr.bf16.mxu0 %v610
    %687 = vmatpush1.bf16.msra.mxu0 %v609
    %688 = vmatprep.mubr.bf16.mxu0 0
    %689 = vmatmul.mubr.bf16.gmra.mrb[0].mxu0 0
    %v690 = vpop.f32.mrb[0].mxu0
    %v691 = vadd.f32 0.0, %v690
    %v692 = vpop.f32.mrb[0].mxu0
    %v693 = vadd.f32 0.0, %v692
    %v694 = vpop.f32.mrb[0].mxu0
    %v695 = vpop.f32.mrb[0].mxu0
    %696 = vdwg.mxu0
    %697 = vmatprep.subr.bf16.mxu0 %v492
    %698 = vmatpush1.bf16.msra.mxu0 %v491
    %699 = vmatprep.subr.bf16.mxu0 %v500
    %700 = vmatpush1.bf16.msra.mxu0 %v499
    %701 = vmatprep.subr.bf16.mxu0 %v508
    %702 = vmatpush1.bf16.msra.mxu0 %v507
    %703 = vmatprep.subr.bf16.mxu0 %v516
    %704 = vmatpush1.bf16.msra.mxu0 %v515
    %705 = vmatprep.subr.bf16.mxu0 %v524
    %706 = vmatpush1.bf16.msra.mxu0 %v523
    %707 = vmatprep.subr.bf16.mxu0 %v532
    %708 = vmatpush1.bf16.msra.mxu0 %v531
    %709 = vmatprep.subr.bf16.mxu0 %v540
    %710 = vmatpush1.bf16.msra.mxu0 %v539
    %711 = vmatprep.subr.bf16.mxu0 %v548
    %712 = vmatpush1.bf16.msra.mxu0 %v547
    %713 = vmatprep.subr.bf16.mxu0 %v556
    %714 = vmatpush1.bf16.msra.mxu0 %v555
    %715 = vmatprep.subr.bf16.mxu0 %v564
    %716 = vmatpush1.bf16.msra.mxu0 %v563
    %717 = vmatprep.subr.bf16.mxu0 %v572
    %718 = vmatpush1.bf16.msra.mxu0 %v571
    %719 = vmatprep.subr.bf16.mxu0 %v580
    %720 = vmatpush1.bf16.msra.mxu0 %v579
    %721 = vmatprep.subr.bf16.mxu0 %v588
    %722 = vmatpush1.bf16.msra.mxu0 %v587
    %723 = vmatprep.subr.bf16.mxu0 %v596
    %724 = vmatpush1.bf16.msra.mxu0 %v595
    %725 = vmatprep.subr.bf16.mxu0 %v604
    %726 = vmatpush1.bf16.msra.mxu0 %v603
    %727 = vmatprep.subr.bf16.mxu0 %v612
    %728 = vmatpush1.bf16.msra.mxu0 %v611
    %729 = vmatprep.mubr.bf16.mxu0 0
    %730 = vmatmul.mubr.bf16.gmra.mrb[0].mxu0 0
    %v731 = vpop.f32.mrb[0].mxu0
    %v732 = vadd.f32 0.0, %v731
    %v733 = vpop.f32.mrb[0].mxu0
    %v734 = vadd.f32 0.0, %v733
    %v735 = vpop.f32.mrb[0].mxu0
    %v736 = vpop.f32.mrb[0].mxu0
    %737 = vdwg.mxu0
    %738 = vmatprep.subr.bf16.mxu0 %v494
    %739 = vmatpush1.bf16.msra.mxu0 %v493
    %740 = vmatprep.subr.bf16.mxu0 %v502
    %741 = vmatpush1.bf16.msra.mxu0 %v501
    %742 = vmatprep.subr.bf16.mxu0 %v510
    %743 = vmatpush1.bf16.msra.mxu0 %v509
    %744 = vmatprep.subr.bf16.mxu0 %v518
    %745 = vmatpush1.bf16.msra.mxu0 %v517
    %746 = vmatprep.subr.bf16.mxu0 %v526
    %747 = vmatpush1.bf16.msra.mxu0 %v525
    %748 = vmatprep.subr.bf16.mxu0 %v534
    %749 = vmatpush1.bf16.msra.mxu0 %v533
    %750 = vmatprep.subr.bf16.mxu0 %v542
    %751 = vmatpush1.bf16.msra.mxu0 %v541
    %752 = vmatprep.subr.bf16.mxu0 %v550
    %753 = vmatpush1.bf16.msra.mxu0 %v549
    %754 = vmatprep.subr.bf16.mxu0 %v558
    %755 = vmatpush1.bf16.msra.mxu0 %v557
    %756 = vmatprep.subr.bf16.mxu0 %v566
    %757 = vmatpush1.bf16.msra.mxu0 %v565
    %758 = vmatprep.subr.bf16.mxu0 %v574
    %759 = vmatpush1.bf16.msra.mxu0 %v573
    %760 = vmatprep.subr.bf16.mxu0 %v582
    %761 = vmatpush1.bf16.msra.mxu0 %v581
    %762 = vmatprep.subr.bf16.mxu0 %v590
    %763 = vmatpush1.bf16.msra.mxu0 %v589
    %764 = vmatprep.subr.bf16.mxu0 %v598
    %765 = vmatpush1.bf16.msra.mxu0 %v597
    %766 = vmatprep.subr.bf16.mxu0 %v606
    %767 = vmatpush1.bf16.msra.mxu0 %v605
    %768 = vmatprep.subr.bf16.mxu0 %v614
    %769 = vmatpush1.bf16.msra.mxu0 %v613
    %770 = vmatprep.mubr.bf16.mxu0 0
    %771 = vmatmul.mubr.bf16.gmra.mrb[0].mxu0 0
    %v772 = vpop.f32.mrb[0].mxu0
    %v773 = vadd.f32 0.0, %v772
    %v774 = vpop.f32.mrb[0].mxu0
    %v775 = vadd.f32 0.0, %v774
    %v776 = vpop.f32.mrb[0].mxu0
    %v777 = vpop.f32.mrb[0].mxu0
    %778 = vdwg.mxu0
    %v779 = vadd.f32 %v346, %v650
    %v780 = vadd.f32 %v348, %v652
    %v781 = vadd.f32 %v389, %v691
    %v782 = vadd.f32 %v391, %v693
    %v783 = vadd.f32 %v432, %v732
    %v784 = vadd.f32 %v434, %v734
    %v785 = vadd.f32 %v475, %v773
    %v786 = vadd.f32 %v477, %v775
    %v787 = vxor.u32 %v779, 2147483648
    %v788 = vxor.u32 %v780, 2147483648
    %v789 = vxor.u32 %v781, 2147483648
    %v790 = vxor.u32 %v782, 2147483648
    %v791 = vxor.u32 %v783, 2147483648
    %v792 = vxor.u32 %v784, 2147483648
    %v793 = vmul.f32 %v787, 1.442695
    %v794 = vpow.pop %v793
    %v795 = vmul.f32 %v788, 1.442695
    %v796 = vpow.pop %v795
    %v797 = vmul.f32 %v789, 1.442695
    %v798 = vpow.pop %v797
    %v799 = vmul.f32 %v790, 1.442695
    %v800 = vpow.pop %v799
    %v801 = vmul.f32 %v791, 1.442695
    %v802 = vpow.pop %v801
    %v803 = vmul.f32 %v792, 1.442695
    %v804 = vpow.pop %v803
    %v805 = vadd.f32 %v794, 1.0
    %v806 = vadd.f32 %v796, 1.0
    %v807 = vadd.f32 %v798, 1.0
    %v808 = vadd.f32 %v800, 1.0
    %v809 = vadd.f32 %v802, 1.0
    %v810 = vadd.f32 %v804, 1.0
    %v811 = vrcp.pop %v805
    %v812 = vmul.f32 1.0, %v811
    %v813 = vrcp.pop %v806
    %v814 = vmul.f32 1.0, %v813
    %v815 = vrcp.pop %v807
    %v816 = vmul.f32 1.0, %v815
    %v817 = vrcp.pop %v808
    %v818 = vmul.f32 1.0, %v817
    %v819 = vrcp.pop %v809
    %v820 = vmul.f32 1.0, %v819
    %v821 = vrcp.pop %v810
    %v822 = vmul.f32 1.0, %v821
    %v823 = vtanh.pop %v785
    %v824 = vtanh.pop %v786
    %v825 = vmul.f32 %v816, 0.0
    %v826 = vmul.f32 %v818, 0.0
    %v827 = vmul.f32 %v812, %v823
    %v828 = vmul.f32 %v814, %v824
    %v829 = vadd.f32 %v825, %v827
    %v830 = vadd.f32 %v826, %v828
    %v831 = vtanh.pop %v829
    %v832 = vtanh.pop %v830
    %v833 = vmul.f32 %v820, %v831
    %v834 = vmul.f32 %v822, %v832
    %v835 = vpack.c.bf16 %v833, %v833
    %v836 = vpack.c.bf16 %v834, %v834
    %837 = vmatprep.subr.bf16.mxu0 %v488
    %838 = vmatpush1.bf16.msra.mxu0 %v487
    %839 = vmatprep.subr.bf16.mxu0 %v496
    %840 = vmatpush1.bf16.msra.mxu0 %v495
    %841 = vmatprep.subr.bf16.mxu0 %v504
    %842 = vmatpush1.bf16.msra.mxu0 %v503
    %843 = vmatprep.subr.bf16.mxu0 %v512
    %844 = vmatpush1.bf16.msra.mxu0 %v511
    %845 = vmatprep.subr.bf16.mxu0 %v520
    %846 = vmatpush1.bf16.msra.mxu0 %v519
    %847 = vmatprep.subr.bf16.mxu0 %v528
    %848 = vmatpush1.bf16.msra.mxu0 %v527
    %849 = vmatprep.subr.bf16.mxu0 %v536
    %850 = vmatpush1.bf16.msra.mxu0 %v535
    %851 = vmatprep.subr.bf16.mxu0 %v544
    %852 = vmatpush1.bf16.msra.mxu0 %v543
    %853 = vmatprep.subr.bf16.mxu0 %v552
    %854 = vmatpush1.bf16.msra.mxu0 %v551
    %855 = vmatprep.subr.bf16.mxu0 %v560
    %856 = vmatpush1.bf16.msra.mxu0 %v559
    %857 = vmatprep.subr.bf16.mxu0 %v568
    %858 = vmatpush1.bf16.msra.mxu0 %v567
    %859 = vmatprep.subr.bf16.mxu0 %v576
    %860 = vmatpush1.bf16.msra.mxu0 %v575
    %861 = vmatprep.subr.bf16.mxu0 %v584
    %862 = vmatpush1.bf16.msra.mxu0 %v583
    %863 = vmatprep.subr.bf16.mxu0 %v592
    %864 = vmatpush1.bf16.msra.mxu0 %v591
    %865 = vmatprep.subr.bf16.mxu0 %v600
    %866 = vmatpush1.bf16.msra.mxu0 %v599
    %867 = vmatprep.subr.bf16.mxu0 %v608
    %868 = vmatpush1.bf16.msra.mxu0 %v607
    %869 = vmatprep.mubr.bf16.mxu0 %v836
    %870 = vmatmul.mubr.bf16.gmra.mrb[0].mxu0 %v835
    %v871 = vpop.f32.mrb[0].mxu0
    %v872 = vadd.f32 0.0, %v871
    %v873 = vpop.f32.mrb[0].mxu0
    %v874 = vadd.f32 0.0, %v873
    %v875 = vpop.f32.mrb[0].mxu0
    %v876 = vpop.f32.mrb[0].mxu0
    %877 = vdwg.mxu0
    %878 = vmatprep.subr.bf16.mxu0 %v490
    %879 = vmatpush1.bf16.msra.mxu0 %v489
    %880 = vmatprep.subr.bf16.mxu0 %v498
    %881 = vmatpush1.bf16.msra.mxu0 %v497
    %882 = vmatprep.subr.bf16.mxu0 %v506
    %883 = vmatpush1.bf16.msra.mxu0 %v505
    %884 = vmatprep.subr.bf16.mxu0 %v514
    %885 = vmatpush1.bf16.msra.mxu0 %v513
    %886 = vmatprep.subr.bf16.mxu0 %v522
    %887 = vmatpush1.bf16.msra.mxu0 %v521
    %888 = vmatprep.subr.bf16.mxu0 %v530
    %889 = vmatpush1.bf16.msra.mxu0 %v529
    %890 = vmatprep.subr.bf16.mxu0 %v538
    %891 = vmatpush1.bf16.msra.mxu0 %v537
    %892 = vmatprep.subr.bf16.mxu0 %v546
    %893 = vmatpush1.bf16.msra.mxu0 %v545
    %894 = vmatprep.subr.bf16.mxu0 %v554
    %895 = vmatpush1.bf16.msra.mxu0 %v553
    %896 = vmatprep.subr.bf16.mxu0 %v562
    %897 = vmatpush1.bf16.msra.mxu0 %v561
    %898 = vmatprep.subr.bf16.mxu0 %v570
    %899 = vmatpush1.bf16.msra.mxu0 %v569
    %900 = vmatprep.subr.bf16.mxu0 %v578
    %901 = vmatpush1.bf16.msra.mxu0 %v577
    %902 = vmatprep.subr.bf16.mxu0 %v586
    %903 = vmatpush1.bf16.msra.mxu0 %v585
    %904 = vmatprep.subr.bf16.mxu0 %v594
    %905 = vmatpush1.bf16.msra.mxu0 %v593
    %906 = vmatprep.subr.bf16.mxu0 %v602
    %907 = vmatpush1.bf16.msra.mxu0 %v601
    %908 = vmatprep.subr.bf16.mxu0 %v610
    %909 = vmatpush1.bf16.msra.mxu0 %v609
    %910 = vmatprep.mubr.bf16.mxu0 %v836
    %911 = vmatmul.mubr.bf16.gmra.mrb[0].mxu0 %v835
    %v912 = vpop.f32.mrb[0].mxu0
    %v913 = vadd.f32 0.0, %v912
    %v914 = vpop.f32.mrb[0].mxu0
    %v915 = vadd.f32 0.0, %v914
    %v916 = vpop.f32.mrb[0].mxu0
    %v917 = vpop.f32.mrb[0].mxu0
    %918 = vdwg.mxu0
    %919 = vmatprep.subr.bf16.mxu0 %v492
    %920 = vmatpush1.bf16.msra.mxu0 %v491
    %921 = vmatprep.subr.bf16.mxu0 %v500
    %922 = vmatpush1.bf16.msra.mxu0 %v499
    %923 = vmatprep.subr.bf16.mxu0 %v508
    %924 = vmatpush1.bf16.msra.mxu0 %v507
    %925 = vmatprep.subr.bf16.mxu0 %v516
    %926 = vmatpush1.bf16.msra.mxu0 %v515
    %927 = vmatprep.subr.bf16.mxu0 %v524
    %928 = vmatpush1.bf16.msra.mxu0 %v523
    %929 = vmatprep.subr.bf16.mxu0 %v532
    %930 = vmatpush1.bf16.msra.mxu0 %v531
    %931 = vmatprep.subr.bf16.mxu0 %v540
    %932 = vmatpush1.bf16.msra.mxu0 %v539
    %933 = vmatprep.subr.bf16.mxu0 %v548
    %934 = vmatpush1.bf16.msra.mxu0 %v547
    %935 = vmatprep.subr.bf16.mxu0 %v556
    %936 = vmatpush1.bf16.msra.mxu0 %v555
    %937 = vmatprep.subr.bf16.mxu0 %v564
    %938 = vmatpush1.bf16.msra.mxu0 %v563
    %939 = vmatprep.subr.bf16.mxu0 %v572
    %940 = vmatpush1.bf16.msra.mxu0 %v571
    %941 = vmatprep.subr.bf16.mxu0 %v580
    %942 = vmatpush1.bf16.msra.mxu0 %v579
    %943 = vmatprep.subr.bf16.mxu0 %v588
    %944 = vmatpush1.bf16.msra.mxu0 %v587
    %945 = vmatprep.subr.bf16.mxu0 %v596
    %946 = vmatpush1.bf16.msra.mxu0 %v595
    %947 = vmatprep.subr.bf16.mxu0 %v604
    %948 = vmatpush1.bf16.msra.mxu0 %v603
    %949 = vmatprep.subr.bf16.mxu0 %v612
    %950 = vmatpush1.bf16.msra.mxu0 %v611
    %951 = vmatprep.mubr.bf16.mxu0 %v836
    %952 = vmatmul.mubr.bf16.gmra.mrb[0].mxu0 %v835
    %v953 = vpop.f32.mrb[0].mxu0
    %v954 = vadd.f32 0.0, %v953
    %v955 = vpop.f32.mrb[0].mxu0
    %v956 = vadd.f32 0.0, %v955
    %v957 = vpop.f32.mrb[0].mxu0
    %v958 = vpop.f32.mrb[0].mxu0
    %959 = vdwg.mxu0
    %960 = vmatprep.subr.bf16.mxu0 %v494
    %961 = vmatpush1.bf16.msra.mxu0 %v493
    %962 = vmatprep.subr.bf16.mxu0 %v502
    %963 = vmatpush1.bf16.msra.mxu0 %v501
    %964 = vmatprep.subr.bf16.mxu0 %v510
    %965 = vmatpush1.bf16.msra.mxu0 %v509
    %966 = vmatprep.subr.bf16.mxu0 %v518
    %967 = vmatpush1.bf16.msra.mxu0 %v517
    %968 = vmatprep.subr.bf16.mxu0 %v526
    %969 = vmatpush1.bf16.msra.mxu0 %v525
    %970 = vmatprep.subr.bf16.mxu0 %v534
    %971 = vmatpush1.bf16.msra.mxu0 %v533
    %972 = vmatprep.subr.bf16.mxu0 %v542
    %973 = vmatpush1.bf16.msra.mxu0 %v541
    %974 = vmatprep.subr.bf16.mxu0 %v550
    %975 = vmatpush1.bf16.msra.mxu0 %v549
    %976 = vmatprep.subr.bf16.mxu0 %v558
    %977 = vmatpush1.bf16.msra.mxu0 %v557
    %978 = vmatprep.subr.bf16.mxu0 %v566
    %979 = vmatpush1.bf16.msra.mxu0 %v565
    %980 = vmatprep.subr.bf16.mxu0 %v574
    %981 = vmatpush1.bf16.msra.mxu0 %v573
    %982 = vmatprep.subr.bf16.mxu0 %v582
    %983 = vmatpush1.bf16.msra.mxu0 %v581
    %984 = vmatprep.subr.bf16.mxu0 %v590
    %985 = vmatpush1.bf16.msra.mxu0 %v589
    %986 = vmatprep.subr.bf16.mxu0 %v598
    %987 = vmatpush1.bf16.msra.mxu0 %v597
    %988 = vmatprep.subr.bf16.mxu0 %v606
    %989 = vmatpush1.bf16.msra.mxu0 %v605
    %990 = vmatprep.subr.bf16.mxu0 %v614
    %991 = vmatpush1.bf16.msra.mxu0 %v613
    %992 = vmatprep.mubr.bf16.mxu0 %v836
    %993 = vmatmul.mubr.bf16.gmra.mrb[0].mxu0 %v835
    %v994 = vpop.f32.mrb[0].mxu0
    %v995 = vadd.f32 0.0, %v994
    %v996 = vpop.f32.mrb[0].mxu0
    %v997 = vadd.f32 0.0, %v996
    %v998 = vpop.f32.mrb[0].mxu0
    %v999 = vpop.f32.mrb[0].mxu0
    %1000 = vdwg.mxu0
    %v1009 = vrot.slane %v872, 6
    %v1010 = vrot.slane %v874, 6
    %v1011 = vrot.slane %v913, 6
    %v1012 = vrot.slane %v915, 6
    %v1013 = vrot.slane %v954, 6
    %v1014 = vrot.slane %v956, 6
    %v1015 = vrot.slane %v995, 6
    %v1016 = vrot.slane %v997, 6
    %v1025 = vadd.f32 %v346, %v1009
    %v1026 = vadd.f32 %v348, %v1010
    %v1027 = vadd.f32 %v389, %v1011
    %v1028 = vadd.f32 %v391, %v1012
    %v1029 = vadd.f32 %v432, %v1013
    %v1030 = vadd.f32 %v434, %v1014
    %v1031 = vadd.f32 %v475, %v1015
    %v1032 = vadd.f32 %v477, %v1016
    %v1033 = vxor.u32 %v1025, 2147483648
    %v1034 = vxor.u32 %v1026, 2147483648
    %v1035 = vxor.u32 %v1027, 2147483648
    %v1036 = vxor.u32 %v1028, 2147483648
    %v1037 = vxor.u32 %v1029, 2147483648
    %v1038 = vxor.u32 %v1030, 2147483648
    %v1039 = vmul.f32 %v1033, 1.442695
    %v1040 = vpow.pop %v1039
    %v1041 = vmul.f32 %v1034, 1.442695
    %v1042 = vpow.pop %v1041
    %v1043 = vmul.f32 %v1035, 1.442695
    %v1044 = vpow.pop %v1043
    %v1045 = vmul.f32 %v1036, 1.442695
    %v1046 = vpow.pop %v1045
    %v1047 = vmul.f32 %v1037, 1.442695
    %v1048 = vpow.pop %v1047
    %v1049 = vmul.f32 %v1038, 1.442695
    %v1050 = vpow.pop %v1049
    %v1051 = vadd.f32 %v1040, 1.0
    %v1052 = vadd.f32 %v1042, 1.0
    %v1053 = vadd.f32 %v1044, 1.0
    %v1054 = vadd.f32 %v1046, 1.0
    %v1055 = vadd.f32 %v1048, 1.0
    %v1056 = vadd.f32 %v1050, 1.0
    %v1057 = vrcp.pop %v1051
    %v1058 = vmul.f32 1.0, %v1057
    %v1059 = vrcp.pop %v1052
    %v1060 = vmul.f32 1.0, %v1059
    %v1061 = vrcp.pop %v1053
    %v1062 = vmul.f32 1.0, %v1061
    %v1063 = vrcp.pop %v1054
    %v1064 = vmul.f32 1.0, %v1063
    %v1065 = vrcp.pop %v1055
    %v1066 = vmul.f32 1.0, %v1065
    %v1067 = vrcp.pop %v1056
    %v1068 = vmul.f32 1.0, %v1067
    %v1069 = vtanh.pop %v1031
    %v1070 = vtanh.pop %v1032
    %v1073 = vrot.slane %v829, 6
    %v1074 = vrot.slane %v830, 6
    %v1077 = vmul.f32 %v1062, %v1073
    %v1078 = vmul.f32 %v1064, %v1074
    %v1079 = vmul.f32 %v1058, %v1069
    %v1080 = vmul.f32 %v1060, %v1070
    %v1081 = vadd.f32 %v1077, %v1079
    %v1082 = vadd.f32 %v1078, %v1080
    %v1083 = vtanh.pop %v1081
    %v1084 = vtanh.pop %v1082
    %v1085 = vmul.f32 %v1066, %v1083
    %v1086 = vmul.f32 %v1068, %v1084
    %v1087 = vpack.c.bf16 %v1085, %v1085
    %v1088 = vpack.c.bf16 %v1086, %v1086
    %v1091 = vrot.slane %v1087, 1
    %v1092 = vrot.slane %v1088, 1
    %1095 = vmatprep.subr.bf16.mxu0 %v488
    %1096 = vmatpush1.bf16.msra.mxu0 %v487
    %1097 = vmatprep.subr.bf16.mxu0 %v496
    %1098 = vmatpush1.bf16.msra.mxu0 %v495
    %1099 = vmatprep.subr.bf16.mxu0 %v504
    %1100 = vmatpush1.bf16.msra.mxu0 %v503
    %1101 = vmatprep.subr.bf16.mxu0 %v512
    %1102 = vmatpush1.bf16.msra.mxu0 %v511
    %1103 = vmatprep.subr.bf16.mxu0 %v520
    %1104 = vmatpush1.bf16.msra.mxu0 %v519
    %1105 = vmatprep.subr.bf16.mxu0 %v528
    %1106 = vmatpush1.bf16.msra.mxu0 %v527
    %1107 = vmatprep.subr.bf16.mxu0 %v536
    %1108 = vmatpush1.bf16.msra.mxu0 %v535
    %1109 = vmatprep.subr.bf16.mxu0 %v544
    %1110 = vmatpush1.bf16.msra.mxu0 %v543
    %1111 = vmatprep.subr.bf16.mxu0 %v552
    %1112 = vmatpush1.bf16.msra.mxu0 %v551
    %1113 = vmatprep.subr.bf16.mxu0 %v560
    %1114 = vmatpush1.bf16.msra.mxu0 %v559
    %1115 = vmatprep.subr.bf16.mxu0 %v568
    %1116 = vmatpush1.bf16.msra.mxu0 %v567
    %1117 = vmatprep.subr.bf16.mxu0 %v576
    %1118 = vmatpush1.bf16.msra.mxu0 %v575
    %1119 = vmatprep.subr.bf16.mxu0 %v584
    %1120 = vmatpush1.bf16.msra.mxu0 %v583
    %1121 = vmatprep.subr.bf16.mxu0 %v592
    %1122 = vmatpush1.bf16.msra.mxu0 %v591
    %1123 = vmatprep.subr.bf16.mxu0 %v600
    %1124 = vmatpush1.bf16.msra.mxu0 %v599
    %1125 = vmatprep.subr.bf16.mxu0 %v608
    %1126 = vmatpush1.bf16.msra.mxu0 %v607
    %1127 = vmatprep.mubr.bf16.mxu0 %v1092
    %1128 = vmatmul.mubr.bf16.gmra.mrb[0].mxu0 %v1091
    %v1129 = vpop.f32.mrb[0].mxu0
    %v1130 = vadd.f32 0.0, %v1129
    %v1131 = vpop.f32.mrb[0].mxu0
    %v1132 = vadd.f32 0.0, %v1131
    %v1133 = vpop.f32.mrb[0].mxu0
    %v1134 = vpop.f32.mrb[0].mxu0
    %1135 = vdwg.mxu0
    %1136 = vmatprep.subr.bf16.mxu0 %v490
    %1137 = vmatpush1.bf16.msra.mxu0 %v489
    %1138 = vmatprep.subr.bf16.mxu0 %v498
    %1139 = vmatpush1.bf16.msra.mxu0 %v497
    %1140 = vmatprep.subr.bf16.mxu0 %v506
    %1141 = vmatpush1.bf16.msra.mxu0 %v505
    %1142 = vmatprep.subr.bf16.mxu0 %v514
    %1143 = vmatpush1.bf16.msra.mxu0 %v513
    %1144 = vmatprep.subr.bf16.mxu0 %v522
    %1145 = vmatpush1.bf16.msra.mxu0 %v521
    %1146 = vmatprep.subr.bf16.mxu0 %v530
    %1147 = vmatpush1.bf16.msra.mxu0 %v529
    %1148 = vmatprep.subr.bf16.mxu0 %v538
    %1149 = vmatpush1.bf16.msra.mxu0 %v537
    %1150 = vmatprep.subr.bf16.mxu0 %v546
    %1151 = vmatpush1.bf16.msra.mxu0 %v545
    %1152 = vmatprep.subr.bf16.mxu0 %v554
    %1153 = vmatpush1.bf16.msra.mxu0 %v553
    %1154 = vmatprep.subr.bf16.mxu0 %v562
    %1155 = vmatpush1.bf16.msra.mxu0 %v561
    %1156 = vmatprep.subr.bf16.mxu0 %v570
    %1157 = vmatpush1.bf16.msra.mxu0 %v569
    %1158 = vmatprep.subr.bf16.mxu0 %v578
    %1159 = vmatpush1.bf16.msra.mxu0 %v577
    %1160 = vmatprep.subr.bf16.mxu0 %v586
    %1161 = vmatpush1.bf16.msra.mxu0 %v585
    %1162 = vmatprep.subr.bf16.mxu0 %v594
    %1163 = vmatpush1.bf16.msra.mxu0 %v593
    %1164 = vmatprep.subr.bf16.mxu0 %v602
    %1165 = vmatpush1.bf16.msra.mxu0 %v601
    %1166 = vmatprep.subr.bf16.mxu0 %v610
    %1167 = vmatpush1.bf16.msra.mxu0 %v609
    %1168 = vmatprep.mubr.bf16.mxu0 %v1092
    %1169 = vmatmul.mubr.bf16.gmra.mrb[0].mxu0 %v1091
    %v1170 = vpop.f32.mrb[0].mxu0
    %v1171 = vadd.f32 0.0, %v1170
    %v1172 = vpop.f32.mrb[0].mxu0
    %v1173 = vadd.f32 0.0, %v1172
    %v1174 = vpop.f32.mrb[0].mxu0
    %v1175 = vpop.f32.mrb[0].mxu0
    %1176 = vdwg.mxu0
    %1177 = vmatprep.subr.bf16.mxu0 %v492
    %1178 = vmatpush1.bf16.msra.mxu0 %v491
    %1179 = vmatprep.subr.bf16.mxu0 %v500
    %1180 = vmatpush1.bf16.msra.mxu0 %v499
    %1181 = vmatprep.subr.bf16.mxu0 %v508
    %1182 = vmatpush1.bf16.msra.mxu0 %v507
    %1183 = vmatprep.subr.bf16.mxu0 %v516
    %1184 = vmatpush1.bf16.msra.mxu0 %v515
    %1185 = vmatprep.subr.bf16.mxu0 %v524
    %1186 = vmatpush1.bf16.msra.mxu0 %v523
    %1187 = vmatprep.subr.bf16.mxu0 %v532
    %1188 = vmatpush1.bf16.msra.mxu0 %v531
    %1189 = vmatprep.subr.bf16.mxu0 %v540
    %1190 = vmatpush1.bf16.msra.mxu0 %v539
    %1191 = vmatprep.subr.bf16.mxu0 %v548
    %1192 = vmatpush1.bf16.msra.mxu0 %v547
    %1193 = vmatprep.subr.bf16.mxu0 %v556
    %1194 = vmatpush1.bf16.msra.mxu0 %v555
    %1195 = vmatprep.subr.bf16.mxu0 %v564
    %1196 = vmatpush1.bf16.msra.mxu0 %v563
    %1197 = vmatprep.subr.bf16.mxu0 %v572
    %1198 = vmatpush1.bf16.msra.mxu0 %v571
    %1199 = vmatprep.subr.bf16.mxu0 %v580
    %1200 = vmatpush1.bf16.msra.mxu0 %v579
    %1201 = vmatprep.subr.bf16.mxu0 %v588
    %1202 = vmatpush1.bf16.msra.mxu0 %v587
    %1203 = vmatprep.subr.bf16.mxu0 %v596
    %1204 = vmatpush1.bf16.msra.mxu0 %v595
    %1205 = vmatprep.subr.bf16.mxu0 %v604
    %1206 = vmatpush1.bf16.msra.mxu0 %v603
    %1207 = vmatprep.subr.bf16.mxu0 %v612
    %1208 = vmatpush1.bf16.msra.mxu0 %v611
    %1209 = vmatprep.mubr.bf16.mxu0 %v1092
    %1210 = vmatmul.mubr.bf16.gmra.mrb[0].mxu0 %v1091
    %v1211 = vpop.f32.mrb[0].mxu0
    %v1212 = vadd.f32 0.0, %v1211
    %v1213 = vpop.f32.mrb[0].mxu0
    %v1214 = vadd.f32 0.0, %v1213
    %v1215 = vpop.f32.mrb[0].mxu0
    %v1216 = vpop.f32.mrb[0].mxu0
    %1217 = vdwg.mxu0
    %1218 = vmatprep.subr.bf16.mxu0 %v494
    %1219 = vmatpush1.bf16.msra.mxu0 %v493
    %1220 = vmatprep.subr.bf16.mxu0 %v502
    %1221 = vmatpush1.bf16.msra.mxu0 %v501
    %1222 = vmatprep.subr.bf16.mxu0 %v510
    %1223 = vmatpush1.bf16.msra.mxu0 %v509
    %1224 = vmatprep.subr.bf16.mxu0 %v518
    %1225 = vmatpush1.bf16.msra.mxu0 %v517
    %1226 = vmatprep.subr.bf16.mxu0 %v526
    %1227 = vmatpush1.bf16.msra.mxu0 %v525
    %1228 = vmatprep.subr.bf16.mxu0 %v534
    %1229 = vmatpush1.bf16.msra.mxu0 %v533
    %1230 = vmatprep.subr.bf16.mxu0 %v542
    %1231 = vmatpush1.bf16.msra.mxu0 %v541
    %1232 = vmatprep.subr.bf16.mxu0 %v550
    %1233 = vmatpush1.bf16.msra.mxu0 %v549
    %1234 = vmatprep.subr.bf16.mxu0 %v558
    %1235 = vmatpush1.bf16.msra.mxu0 %v557
    %1236 = vmatprep.subr.bf16.mxu0 %v566
    %1237 = vmatpush1.bf16.msra.mxu0 %v565
    %1238 = vmatprep.subr.bf16.mxu0 %v574
    %1239 = vmatpush1.bf16.msra.mxu0 %v573
    %1240 = vmatprep.subr.bf16.mxu0 %v582
    %1241 = vmatpush1.bf16.msra.mxu0 %v581
    %1242 = vmatprep.subr.bf16.mxu0 %v590
    %1243 = vmatpush1.bf16.msra.mxu0 %v589
    %1244 = vmatprep.subr.bf16.mxu0 %v598
    %1245 = vmatpush1.bf16.msra.mxu0 %v597
    %1246 = vmatprep.subr.bf16.mxu0 %v606
    %1247 = vmatpush1.bf16.msra.mxu0 %v605
    %1248 = vmatprep.subr.bf16.mxu0 %v614
    %1249 = vmatpush1.bf16.msra.mxu0 %v613
    %1250 = vmatprep.mubr.bf16.mxu0 %v1092
    %1251 = vmatmul.mubr.bf16.gmra.mrb[0].mxu0 %v1091
    %v1252 = vpop.f32.mrb[0].mxu0
    %v1253 = vadd.f32 0.0, %v1252
    %v1254 = vpop.f32.mrb[0].mxu0
    %v1255 = vadd.f32 0.0, %v1254
    %v1256 = vpop.f32.mrb[0].mxu0
    %v1257 = vpop.f32.mrb[0].mxu0
    %1258 = vdwg.mxu0
    %v1267 = vrot.slane %v1130, 4
    %v1268 = vrot.slane %v1132, 4
    %v1269 = vrot.slane %v1171, 4
    %v1270 = vrot.slane %v1173, 4
    %v1271 = vrot.slane %v1212, 4
    %v1272 = vrot.slane %v1214, 4
    %v1273 = vrot.slane %v1253, 4
    %v1274 = vrot.slane %v1255, 4
    %v1283 = vadd.f32 %v346, %v1267
    %v1284 = vadd.f32 %v348, %v1268
    %v1285 = vadd.f32 %v389, %v1269
    %v1286 = vadd.f32 %v391, %v1270
    %v1287 = vadd.f32 %v432, %v1271
    %v1288 = vadd.f32 %v434, %v1272
    %v1289 = vadd.f32 %v475, %v1273
    %v1290 = vadd.f32 %v477, %v1274
    %v1291 = vxor.u32 %v1283, 2147483648
    %v1292 = vxor.u32 %v1284, 2147483648
    %v1293 = vxor.u32 %v1285, 2147483648
    %v1294 = vxor.u32 %v1286, 2147483648
    %v1295 = vxor.u32 %v1287, 2147483648
    %v1296 = vxor.u32 %v1288, 2147483648
    %v1297 = vmul.f32 %v1291, 1.442695
    %v1298 = vpow.pop %v1297
    %v1299 = vmul.f32 %v1292, 1.442695
    %v1300 = vpow.pop %v1299
    %v1301 = vmul.f32 %v1293, 1.442695
    %v1302 = vpow.pop %v1301
    %v1303 = vmul.f32 %v1294, 1.442695
    %v1304 = vpow.pop %v1303
    %v1305 = vmul.f32 %v1295, 1.442695
    %v1306 = vpow.pop %v1305
    %v1307 = vmul.f32 %v1296, 1.442695
    %v1308 = vpow.pop %v1307
    %v1309 = vadd.f32 %v1298, 1.0
    %v1310 = vadd.f32 %v1300, 1.0
    %v1311 = vadd.f32 %v1302, 1.0
    %v1312 = vadd.f32 %v1304, 1.0
    %v1313 = vadd.f32 %v1306, 1.0
    %v1314 = vadd.f32 %v1308, 1.0
    %v1315 = vrcp.pop %v1309
    %v1316 = vmul.f32 1.0, %v1315
    %v1317 = vrcp.pop %v1310
    %v1318 = vmul.f32 1.0, %v1317
    %v1319 = vrcp.pop %v1311
    %v1320 = vmul.f32 1.0, %v1319
    %v1321 = vrcp.pop %v1312
    %v1322 = vmul.f32 1.0, %v1321
    %v1323 = vrcp.pop %v1313
    %v1324 = vmul.f32 1.0, %v1323
    %v1325 = vrcp.pop %v1314
    %v1326 = vmul.f32 1.0, %v1325
    %v1327 = vtanh.pop %v1289
    %v1328 = vtanh.pop %v1290
    %v1331 = vrot.slane %v1081, 6
    %v1332 = vrot.slane %v1082, 6
    %v1335 = vmul.f32 %v1320, %v1331
    %v1336 = vmul.f32 %v1322, %v1332
    %v1337 = vmul.f32 %v1316, %v1327
    %v1338 = vmul.f32 %v1318, %v1328
    %v1339 = vadd.f32 %v1335, %v1337
    %v1340 = vadd.f32 %v1336, %v1338
    %v1341 = vtanh.pop %v1339
    %v1342 = vtanh.pop %v1340
    %v1343 = vmul.f32 %v1324, %v1341
    %v1344 = vmul.f32 %v1326, %v1342
    %v1345 = vpack.c.bf16 %v1343, %v1343
    %v1346 = vpack.c.bf16 %v1344, %v1344
    %v1349 = vrot.slane %v1345, 2
    %v1350 = vrot.slane %v1346, 2
    %1353 = vmatprep.subr.bf16.mxu0 %v488
    %1354 = vmatpush1.bf16.msra.mxu0 %v487
    %1355 = vmatprep.subr.bf16.mxu0 %v496
    %1356 = vmatpush1.bf16.msra.mxu0 %v495
    %1357 = vmatprep.subr.bf16.mxu0 %v504
    %1358 = vmatpush1.bf16.msra.mxu0 %v503
    %1359 = vmatprep.subr.bf16.mxu0 %v512
    %1360 = vmatpush1.bf16.msra.mxu0 %v511
    %1361 = vmatprep.subr.bf16.mxu0 %v520
    %1362 = vmatpush1.bf16.msra.mxu0 %v519
    %1363 = vmatprep.subr.bf16.mxu0 %v528
    %1364 = vmatpush1.bf16.msra.mxu0 %v527
    %1365 = vmatprep.subr.bf16.mxu0 %v536
    %1366 = vmatpush1.bf16.msra.mxu0 %v535
    %1367 = vmatprep.subr.bf16.mxu0 %v544
    %1368 = vmatpush1.bf16.msra.mxu0 %v543
    %1369 = vmatprep.subr.bf16.mxu0 %v552
    %1370 = vmatpush1.bf16.msra.mxu0 %v551
    %1371 = vmatprep.subr.bf16.mxu0 %v560
    %1372 = vmatpush1.bf16.msra.mxu0 %v559
    %1373 = vmatprep.subr.bf16.mxu0 %v568
    %1374 = vmatpush1.bf16.msra.mxu0 %v567
    %1375 = vmatprep.subr.bf16.mxu0 %v576
    %1376 = vmatpush1.bf16.msra.mxu0 %v575
    %1377 = vmatprep.subr.bf16.mxu0 %v584
    %1378 = vmatpush1.bf16.msra.mxu0 %v583
    %1379 = vmatprep.subr.bf16.mxu0 %v592
    %1380 = vmatpush1.bf16.msra.mxu0 %v591
    %1381 = vmatprep.subr.bf16.mxu0 %v600
    %1382 = vmatpush1.bf16.msra.mxu0 %v599
    %1383 = vmatprep.subr.bf16.mxu0 %v608
    %1384 = vmatpush1.bf16.msra.mxu0 %v607
    %1385 = vmatprep.mubr.bf16.mxu0 %v1350
    %1386 = vmatmul.mubr.bf16.gmra.mrb[0].mxu0 %v1349
    %v1387 = vpop.f32.mrb[0].mxu0
    %v1388 = vadd.f32 0.0, %v1387
    %v1389 = vpop.f32.mrb[0].mxu0
    %v1390 = vadd.f32 0.0, %v1389
    %v1391 = vpop.f32.mrb[0].mxu0
    %v1392 = vpop.f32.mrb[0].mxu0
    %1393 = vdwg.mxu0
    %1394 = vmatprep.subr.bf16.mxu0 %v490
    %1395 = vmatpush1.bf16.msra.mxu0 %v489
    %1396 = vmatprep.subr.bf16.mxu0 %v498
    %1397 = vmatpush1.bf16.msra.mxu0 %v497
    %1398 = vmatprep.subr.bf16.mxu0 %v506
    %1399 = vmatpush1.bf16.msra.mxu0 %v505
    %1400 = vmatprep.subr.bf16.mxu0 %v514
    %1401 = vmatpush1.bf16.msra.mxu0 %v513
    %1402 = vmatprep.subr.bf16.mxu0 %v522
    %1403 = vmatpush1.bf16.msra.mxu0 %v521
    %1404 = vmatprep.subr.bf16.mxu0 %v530
    %1405 = vmatpush1.bf16.msra.mxu0 %v529
    %1406 = vmatprep.subr.bf16.mxu0 %v538
    %1407 = vmatpush1.bf16.msra.mxu0 %v537
    %1408 = vmatprep.subr.bf16.mxu0 %v546
    %1409 = vmatpush1.bf16.msra.mxu0 %v545
    %1410 = vmatprep.subr.bf16.mxu0 %v554
    %1411 = vmatpush1.bf16.msra.mxu0 %v553
    %1412 = vmatprep.subr.bf16.mxu0 %v562
    %1413 = vmatpush1.bf16.msra.mxu0 %v561
    %1414 = vmatprep.subr.bf16.mxu0 %v570
    %1415 = vmatpush1.bf16.msra.mxu0 %v569
    %1416 = vmatprep.subr.bf16.mxu0 %v578
    %1417 = vmatpush1.bf16.msra.mxu0 %v577
    %1418 = vmatprep.subr.bf16.mxu0 %v586
    %1419 = vmatpush1.bf16.msra.mxu0 %v585
    %1420 = vmatprep.subr.bf16.mxu0 %v594
    %1421 = vmatpush1.bf16.msra.mxu0 %v593
    %1422 = vmatprep.subr.bf16.mxu0 %v602
    %1423 = vmatpush1.bf16.msra.mxu0 %v601
    %1424 = vmatprep.subr.bf16.mxu0 %v610
    %1425 = vmatpush1.bf16.msra.mxu0 %v609
    %1426 = vmatprep.mubr.bf16.mxu0 %v1350
    %1427 = vmatmul.mubr.bf16.gmra.mrb[0].mxu0 %v1349
    %v1428 = vpop.f32.mrb[0].mxu0
    %v1429 = vadd.f32 0.0, %v1428
    %v1430 = vpop.f32.mrb[0].mxu0
    %v1431 = vadd.f32 0.0, %v1430
    %v1432 = vpop.f32.mrb[0].mxu0
    %v1433 = vpop.f32.mrb[0].mxu0
    %1434 = vdwg.mxu0
    %1435 = vmatprep.subr.bf16.mxu0 %v492
    %1436 = vmatpush1.bf16.msra.mxu0 %v491
    %1437 = vmatprep.subr.bf16.mxu0 %v500
    %1438 = vmatpush1.bf16.msra.mxu0 %v499
    %1439 = vmatprep.subr.bf16.mxu0 %v508
    %1440 = vmatpush1.bf16.msra.mxu0 %v507
    %1441 = vmatprep.subr.bf16.mxu0 %v516
    %1442 = vmatpush1.bf16.msra.mxu0 %v515
    %1443 = vmatprep.subr.bf16.mxu0 %v524
    %1444 = vmatpush1.bf16.msra.mxu0 %v523
    %1445 = vmatprep.subr.bf16.mxu0 %v532
    %1446 = vmatpush1.bf16.msra.mxu0 %v531
    %1447 = vmatprep.subr.bf16.mxu0 %v540
    %1448 = vmatpush1.bf16.msra.mxu0 %v539
    %1449 = vmatprep.subr.bf16.mxu0 %v548
    %1450 = vmatpush1.bf16.msra.mxu0 %v547
    %1451 = vmatprep.subr.bf16.mxu0 %v556
    %1452 = vmatpush1.bf16.msra.mxu0 %v555
    %1453 = vmatprep.subr.bf16.mxu0 %v564
    %1454 = vmatpush1.bf16.msra.mxu0 %v563
    %1455 = vmatprep.subr.bf16.mxu0 %v572
    %1456 = vmatpush1.bf16.msra.mxu0 %v571
    %1457 = vmatprep.subr.bf16.mxu0 %v580
    %1458 = vmatpush1.bf16.msra.mxu0 %v579
    %1459 = vmatprep.subr.bf16.mxu0 %v588
    %1460 = vmatpush1.bf16.msra.mxu0 %v587
    %1461 = vmatprep.subr.bf16.mxu0 %v596
    %1462 = vmatpush1.bf16.msra.mxu0 %v595
    %1463 = vmatprep.subr.bf16.mxu0 %v604
    %1464 = vmatpush1.bf16.msra.mxu0 %v603
    %1465 = vmatprep.subr.bf16.mxu0 %v612
    %1466 = vmatpush1.bf16.msra.mxu0 %v611
    %1467 = vmatprep.mubr.bf16.mxu0 %v1350
    %1468 = vmatmul.mubr.bf16.gmra.mrb[0].mxu0 %v1349
    %v1469 = vpop.f32.mrb[0].mxu0
    %v1470 = vadd.f32 0.0, %v1469
    %v1471 = vpop.f32.mrb[0].mxu0
    %v1472 = vadd.f32 0.0, %v1471
    %v1473 = vpop.f32.mrb[0].mxu0
    %v1474 = vpop.f32.mrb[0].mxu0
    %1475 = vdwg.mxu0
    %1476 = vmatprep.subr.bf16.mxu0 %v494
    %1477 = vmatpush1.bf16.msra.mxu0 %v493
    %1478 = vmatprep.subr.bf16.mxu0 %v502
    %1479 = vmatpush1.bf16.msra.mxu0 %v501
    %1480 = vmatprep.subr.bf16.mxu0 %v510
    %1481 = vmatpush1.bf16.msra.mxu0 %v509
    %1482 = vmatprep.subr.bf16.mxu0 %v518
    %1483 = vmatpush1.bf16.msra.mxu0 %v517
    %1484 = vmatprep.subr.bf16.mxu0 %v526
    %1485 = vmatpush1.bf16.msra.mxu0 %v525
    %1486 = vmatprep.subr.bf16.mxu0 %v534
    %1487 = vmatpush1.bf16.msra.mxu0 %v533
    %1488 = vmatprep.subr.bf16.mxu0 %v542
    %1489 = vmatpush1.bf16.msra.mxu0 %v541
    %1490 = vmatprep.subr.bf16.mxu0 %v550
    %1491 = vmatpush1.bf16.msra.mxu0 %v549
    %1492 = vmatprep.subr.bf16.mxu0 %v558
    %1493 = vmatpush1.bf16.msra.mxu0 %v557
    %1494 = vmatprep.subr.bf16.mxu0 %v566
    %1495 = vmatpush1.bf16.msra.mxu0 %v565
    %1496 = vmatprep.subr.bf16.mxu0 %v574
    %1497 = vmatpush1.bf16.msra.mxu0 %v573
    %1498 = vmatprep.subr.bf16.mxu0 %v582
    %1499 = vmatpush1.bf16.msra.mxu0 %v581
    %1500 = vmatprep.subr.bf16.mxu0 %v590
    %1501 = vmatpush1.bf16.msra.mxu0 %v589
    %1502 = vmatprep.subr.bf16.mxu0 %v598
    %1503 = vmatpush1.bf16.msra.mxu0 %v597
    %1504 = vmatprep.subr.bf16.mxu0 %v606
    %1505 = vmatpush1.bf16.msra.mxu0 %v605
    %1506 = vmatprep.subr.bf16.mxu0 %v614
    %1507 = vmatpush1.bf16.msra.mxu0 %v613
    %1508 = vmatprep.mubr.bf16.mxu0 %v1350
    %1509 = vmatmul.mubr.bf16.gmra.mrb[0].mxu0 %v1349
    %v1510 = vpop.f32.mrb[0].mxu0
    %v1511 = vadd.f32 0.0, %v1510
    %v1512 = vpop.f32.mrb[0].mxu0
    %v1513 = vadd.f32 0.0, %v1512
    %v1514 = vpop.f32.mrb[0].mxu0
    %v1515 = vpop.f32.mrb[0].mxu0
    %1516 = vdwg.mxu0
    %v1525 = vrot.slane %v1388, 2
    %v1526 = vrot.slane %v1390, 2
    %v1527 = vrot.slane %v1429, 2
    %v1528 = vrot.slane %v1431, 2
    %v1529 = vrot.slane %v1470, 2
    %v1530 = vrot.slane %v1472, 2
    %v1531 = vrot.slane %v1511, 2
    %v1532 = vrot.slane %v1513, 2
    %v1541 = vadd.f32 %v346, %v1525
    %v1542 = vadd.f32 %v348, %v1526
    %v1543 = vadd.f32 %v389, %v1527
    %v1544 = vadd.f32 %v391, %v1528
    %v1545 = vadd.f32 %v432, %v1529
    %v1546 = vadd.f32 %v434, %v1530
    %v1547 = vadd.f32 %v475, %v1531
    %v1548 = vadd.f32 %v477, %v1532
    %v1549 = vxor.u32 %v1541, 2147483648
    %v1550 = vxor.u32 %v1542, 2147483648
    %v1551 = vxor.u32 %v1543, 2147483648
    %v1552 = vxor.u32 %v1544, 2147483648
    %v1553 = vxor.u32 %v1545, 2147483648
    %v1554 = vxor.u32 %v1546, 2147483648
    %v1555 = vmul.f32 %v1549, 1.442695
    %v1556 = vpow.pop %v1555
    %v1557 = vmul.f32 %v1550, 1.442695
    %v1558 = vpow.pop %v1557
    %v1559 = vmul.f32 %v1551, 1.442695
    %v1560 = vpow.pop %v1559
    %v1561 = vmul.f32 %v1552, 1.442695
    %v1562 = vpow.pop %v1561
    %v1563 = vmul.f32 %v1553, 1.442695
    %v1564 = vpow.pop %v1563
    %v1565 = vmul.f32 %v1554, 1.442695
    %v1566 = vpow.pop %v1565
    %v1567 = vadd.f32 %v1556, 1.0
    %v1568 = vadd.f32 %v1558, 1.0
    %v1569 = vadd.f32 %v1560, 1.0
    %v1570 = vadd.f32 %v1562, 1.0
    %v1571 = vadd.f32 %v1564, 1.0
    %v1572 = vadd.f32 %v1566, 1.0
    %v1573 = vrcp.pop %v1567
    %v1574 = vmul.f32 1.0, %v1573
    %v1575 = vrcp.pop %v1568
    %v1576 = vmul.f32 1.0, %v1575
    %v1577 = vrcp.pop %v1569
    %v1578 = vmul.f32 1.0, %v1577
    %v1579 = vrcp.pop %v1570
    %v1580 = vmul.f32 1.0, %v1579
    %v1581 = vrcp.pop %v1571
    %v1582 = vmul.f32 1.0, %v1581
    %v1583 = vrcp.pop %v1572
    %v1584 = vmul.f32 1.0, %v1583
    %v1585 = vtanh.pop %v1547
    %v1586 = vtanh.pop %v1548
    %v1589 = vrot.slane %v1339, 6
    %v1590 = vrot.slane %v1340, 6
    %v1593 = vmul.f32 %v1578, %v1589
    %v1594 = vmul.f32 %v1580, %v1590
    %v1595 = vmul.f32 %v1574, %v1585
    %v1596 = vmul.f32 %v1576, %v1586
    %v1597 = vadd.f32 %v1593, %v1595
    %v1598 = vadd.f32 %v1594, %v1596
    %v1599 = vtanh.pop %v1597
    %v1600 = vtanh.pop %v1598
    %v1601 = vmul.f32 %v1582, %v1599
    %v1602 = vmul.f32 %v1584, %v1600
    %v1603 = vpack.c.bf16 %v1601, %v1601
    %v1604 = vpack.c.bf16 %v1602, %v1602
    %v1607 = vrot.slane %v1603, 3
    %v1608 = vrot.slane %v1604, 3
    %1611 = vmatprep.subr.bf16.mxu0 %v488
    %1612 = vmatpush1.bf16.msra.mxu0 %v487
    %1613 = vmatprep.subr.bf16.mxu0 %v496
    %1614 = vmatpush1.bf16.msra.mxu0 %v495
    %1615 = vmatprep.subr.bf16.mxu0 %v504
    %1616 = vmatpush1.bf16.msra.mxu0 %v503
    %1617 = vmatprep.subr.bf16.mxu0 %v512
    %1618 = vmatpush1.bf16.msra.mxu0 %v511
    %1619 = vmatprep.subr.bf16.mxu0 %v520
    %1620 = vmatpush1.bf16.msra.mxu0 %v519
    %1621 = vmatprep.subr.bf16.mxu0 %v528
    %1622 = vmatpush1.bf16.msra.mxu0 %v527
    %1623 = vmatprep.subr.bf16.mxu0 %v536
    %1624 = vmatpush1.bf16.msra.mxu0 %v535
    %1625 = vmatprep.subr.bf16.mxu0 %v544
    %1626 = vmatpush1.bf16.msra.mxu0 %v543
    %1627 = vmatprep.subr.bf16.mxu0 %v552
    %1628 = vmatpush1.bf16.msra.mxu0 %v551
    %1629 = vmatprep.subr.bf16.mxu0 %v560
    %1630 = vmatpush1.bf16.msra.mxu0 %v559
    %1631 = vmatprep.subr.bf16.mxu0 %v568
    %1632 = vmatpush1.bf16.msra.mxu0 %v567
    %1633 = vmatprep.subr.bf16.mxu0 %v576
    %1634 = vmatpush1.bf16.msra.mxu0 %v575
    %1635 = vmatprep.subr.bf16.mxu0 %v584
    %1636 = vmatpush1.bf16.msra.mxu0 %v583
    %1637 = vmatprep.subr.bf16.mxu0 %v592
    %1638 = vmatpush1.bf16.msra.mxu0 %v591
    %1639 = vmatprep.subr.bf16.mxu0 %v600
    %1640 = vmatpush1.bf16.msra.mxu0 %v599
    %1641 = vmatprep.subr.bf16.mxu0 %v608
    %1642 = vmatpush1.bf16.msra.mxu0 %v607
    %1643 = vmatprep.mubr.bf16.mxu0 %v1608
    %1644 = vmatmul.mubr.bf16.gmra.mrb[0].mxu0 %v1607
    %v1645 = vpop.f32.mrb[0].mxu0
    %v1646 = vadd.f32 0.0, %v1645
    %v1647 = vpop.f32.mrb[0].mxu0
    %v1648 = vadd.f32 0.0, %v1647
    %v1649 = vpop.f32.mrb[0].mxu0
    %v1650 = vpop.f32.mrb[0].mxu0
    %1651 = vdwg.mxu0
    %1652 = vmatprep.subr.bf16.mxu0 %v490
    %1653 = vmatpush1.bf16.msra.mxu0 %v489
    %1654 = vmatprep.subr.bf16.mxu0 %v498
    %1655 = vmatpush1.bf16.msra.mxu0 %v497
    %1656 = vmatprep.subr.bf16.mxu0 %v506
    %1657 = vmatpush1.bf16.msra.mxu0 %v505
    %1658 = vmatprep.subr.bf16.mxu0 %v514
    %1659 = vmatpush1.bf16.msra.mxu0 %v513
    %1660 = vmatprep.subr.bf16.mxu0 %v522
    %1661 = vmatpush1.bf16.msra.mxu0 %v521
    %1662 = vmatprep.subr.bf16.mxu0 %v530
    %1663 = vmatpush1.bf16.msra.mxu0 %v529
    %1664 = vmatprep.subr.bf16.mxu0 %v538
    %1665 = vmatpush1.bf16.msra.mxu0 %v537
    %1666 = vmatprep.subr.bf16.mxu0 %v546
    %1667 = vmatpush1.bf16.msra.mxu0 %v545
    %1668 = vmatprep.subr.bf16.mxu0 %v554
    %1669 = vmatpush1.bf16.msra.mxu0 %v553
    %1670 = vmatprep.subr.bf16.mxu0 %v562
    %1671 = vmatpush1.bf16.msra.mxu0 %v561
    %1672 = vmatprep.subr.bf16.mxu0 %v570
    %1673 = vmatpush1.bf16.msra.mxu0 %v569
    %1674 = vmatprep.subr.bf16.mxu0 %v578
    %1675 = vmatpush1.bf16.msra.mxu0 %v577
    %1676 = vmatprep.subr.bf16.mxu0 %v586
    %1677 = vmatpush1.bf16.msra.mxu0 %v585
    %1678 = vmatprep.subr.bf16.mxu0 %v594
    %1679 = vmatpush1.bf16.msra.mxu0 %v593
    %1680 = vmatprep.subr.bf16.mxu0 %v602
    %1681 = vmatpush1.bf16.msra.mxu0 %v601
    %1682 = vmatprep.subr.bf16.mxu0 %v610
    %1683 = vmatpush1.bf16.msra.mxu0 %v609
    %1684 = vmatprep.mubr.bf16.mxu0 %v1608
    %1685 = vmatmul.mubr.bf16.gmra.mrb[0].mxu0 %v1607
    %v1686 = vpop.f32.mrb[0].mxu0
    %v1687 = vadd.f32 0.0, %v1686
    %v1688 = vpop.f32.mrb[0].mxu0
    %v1689 = vadd.f32 0.0, %v1688
    %v1690 = vpop.f32.mrb[0].mxu0
    %v1691 = vpop.f32.mrb[0].mxu0
    %1692 = vdwg.mxu0
    %1693 = vmatprep.subr.bf16.mxu0 %v492
    %1694 = vmatpush1.bf16.msra.mxu0 %v491
    %1695 = vmatprep.subr.bf16.mxu0 %v500
    %1696 = vmatpush1.bf16.msra.mxu0 %v499
    %1697 = vmatprep.subr.bf16.mxu0 %v508
    %1698 = vmatpush1.bf16.msra.mxu0 %v507
    %1699 = vmatprep.subr.bf16.mxu0 %v516
    %1700 = vmatpush1.bf16.msra.mxu0 %v515
    %1701 = vmatprep.subr.bf16.mxu0 %v524
    %1702 = vmatpush1.bf16.msra.mxu0 %v523
    %1703 = vmatprep.subr.bf16.mxu0 %v532
    %1704 = vmatpush1.bf16.msra.mxu0 %v531
    %1705 = vmatprep.subr.bf16.mxu0 %v540
    %1706 = vmatpush1.bf16.msra.mxu0 %v539
    %1707 = vmatprep.subr.bf16.mxu0 %v548
    %1708 = vmatpush1.bf16.msra.mxu0 %v547
    %1709 = vmatprep.subr.bf16.mxu0 %v556
    %1710 = vmatpush1.bf16.msra.mxu0 %v555
    %1711 = vmatprep.subr.bf16.mxu0 %v564
    %1712 = vmatpush1.bf16.msra.mxu0 %v563
    %1713 = vmatprep.subr.bf16.mxu0 %v572
    %1714 = vmatpush1.bf16.msra.mxu0 %v571
    %1715 = vmatprep.subr.bf16.mxu0 %v580
    %1716 = vmatpush1.bf16.msra.mxu0 %v579
    %1717 = vmatprep.subr.bf16.mxu0 %v588
    %1718 = vmatpush1.bf16.msra.mxu0 %v587
    %1719 = vmatprep.subr.bf16.mxu0 %v596
    %1720 = vmatpush1.bf16.msra.mxu0 %v595
    %1721 = vmatprep.subr.bf16.mxu0 %v604
    %1722 = vmatpush1.bf16.msra.mxu0 %v603
    %1723 = vmatprep.subr.bf16.mxu0 %v612
    %1724 = vmatpush1.bf16.msra.mxu0 %v611
    %1725 = vmatprep.mubr.bf16.mxu0 %v1608
    %1726 = vmatmul.mubr.bf16.gmra.mrb[0].mxu0 %v1607
    %v1727 = vpop.f32.mrb[0].mxu0
    %v1728 = vadd.f32 0.0, %v1727
    %v1729 = vpop.f32.mrb[0].mxu0
    %v1730 = vadd.f32 0.0, %v1729
    %v1731 = vpop.f32.mrb[0].mxu0
    %v1732 = vpop.f32.mrb[0].mxu0
    %1733 = vdwg.mxu0
    %1734 = vmatprep.subr.bf16.mxu0 %v494
    %1735 = vmatpush1.bf16.msra.mxu0 %v493
    %1736 = vmatprep.subr.bf16.mxu0 %v502
    %1737 = vmatpush1.bf16.msra.mxu0 %v501
    %1738 = vmatprep.subr.bf16.mxu0 %v510
    %1739 = vmatpush1.bf16.msra.mxu0 %v509
    %1740 = vmatprep.subr.bf16.mxu0 %v518
    %1741 = vmatpush1.bf16.msra.mxu0 %v517
    %1742 = vmatprep.subr.bf16.mxu0 %v526
    %1743 = vmatpush1.bf16.msra.mxu0 %v525
    %1744 = vmatprep.subr.bf16.mxu0 %v534
    %1745 = vmatpush1.bf16.msra.mxu0 %v533
    %1746 = vmatprep.subr.bf16.mxu0 %v542
    %1747 = vmatpush1.bf16.msra.mxu0 %v541
    %1748 = vmatprep.subr.bf16.mxu0 %v550
    %1749 = vmatpush1.bf16.msra.mxu0 %v549
    %1750 = vmatprep.subr.bf16.mxu0 %v558
    %1751 = vmatpush1.bf16.msra.mxu0 %v557
    %1752 = vmatprep.subr.bf16.mxu0 %v566
    %1753 = vmatpush1.bf16.msra.mxu0 %v565
    %1754 = vmatprep.subr.bf16.mxu0 %v574
    %1755 = vmatpush1.bf16.msra.mxu0 %v573
    %1756 = vmatprep.subr.bf16.mxu0 %v582
    %1757 = vmatpush1.bf16.msra.mxu0 %v581
    %1758 = vmatprep.subr.bf16.mxu0 %v590
    %1759 = vmatpush1.bf16.msra.mxu0 %v589
    %1760 = vmatprep.subr.bf16.mxu0 %v598
    %1761 = vmatpush1.bf16.msra.mxu0 %v597
    %1762 = vmatprep.subr.bf16.mxu0 %v606
    %1763 = vmatpush1.bf16.msra.mxu0 %v605
    %1764 = vmatprep.subr.bf16.mxu0 %v614
    %1765 = vmatpush1.bf16.msra.mxu0 %v613
    %1766 = vmatprep.mubr.bf16.mxu0 %v1608
    %1767 = vmatmul.mubr.bf16.gmra.mrb[0].mxu0 %v1607
    %v1768 = vpop.f32.mrb[0].mxu0
    %v1769 = vadd.f32 0.0, %v1768
    %v1770 = vpop.f32.mrb[0].mxu0
    %v1771 = vadd.f32 0.0, %v1770
    %v1772 = vpop.f32.mrb[0].mxu0
    %v1773 = vpop.f32.mrb[0].mxu0
    %1774 = vdwg.mxu0
    %v1775 = vadd.f32 %v350, %v1646
    %v1776 = vadd.f32 %v352, %v1648
    %v1777 = vadd.f32 %v393, %v1687
    %v1778 = vadd.f32 %v395, %v1689
    %v1779 = vadd.f32 %v436, %v1728
    %v1780 = vadd.f32 %v438, %v1730
    %v1781 = vadd.f32 %v479, %v1769
    %v1782 = vadd.f32 %v481, %v1771
    %v1783 = vxor.u32 %v1775, 2147483648
    %v1784 = vxor.u32 %v1776, 2147483648
    %v1785 = vxor.u32 %v1777, 2147483648
    %v1786 = vxor.u32 %v1778, 2147483648
    %v1787 = vxor.u32 %v1779, 2147483648
    %v1788 = vxor.u32 %v1780, 2147483648
    %v1789 = vmul.f32 %v1783, 1.442695
    %v1790 = vpow.pop %v1789
    %v1791 = vmul.f32 %v1784, 1.442695
    %v1792 = vpow.pop %v1791
    %v1793 = vmul.f32 %v1785, 1.442695
    %v1794 = vpow.pop %v1793
    %v1795 = vmul.f32 %v1786, 1.442695
    %v1796 = vpow.pop %v1795
    %v1797 = vmul.f32 %v1787, 1.442695
    %v1798 = vpow.pop %v1797
    %v1799 = vmul.f32 %v1788, 1.442695
    %v1800 = vpow.pop %v1799
    %v1801 = vadd.f32 %v1790, 1.0
    %v1802 = vadd.f32 %v1792, 1.0
    %v1803 = vadd.f32 %v1794, 1.0
    %v1804 = vadd.f32 %v1796, 1.0
    %v1805 = vadd.f32 %v1798, 1.0
    %v1806 = vadd.f32 %v1800, 1.0
    %v1807 = vrcp.pop %v1801
    %v1808 = vmul.f32 1.0, %v1807
    %v1809 = vrcp.pop %v1802
    %v1810 = vmul.f32 1.0, %v1809
    %v1811 = vrcp.pop %v1803
    %v1812 = vmul.f32 1.0, %v1811
    %v1813 = vrcp.pop %v1804
    %v1814 = vmul.f32 1.0, %v1813
    %v1815 = vrcp.pop %v1805
    %v1816 = vmul.f32 1.0, %v1815
    %v1817 = vrcp.pop %v1806
    %v1818 = vmul.f32 1.0, %v1817
    %v1819 = vtanh.pop %v1781
    %v1820 = vtanh.pop %v1782
    %v1823 = vrot.slane %v1597, 6
    %v1824 = vrot.slane %v1598, 6
    %v1827 = vmul.f32 %v1812, %v1823
    %v1828 = vmul.f32 %v1814, %v1824
    %v1829 = vmul.f32 %v1808, %v1819
    %v1830 = vmul.f32 %v1810, %v1820
    %v1831 = vadd.f32 %v1827, %v1829
    %v1832 = vadd.f32 %v1828, %v1830
    %v1833 = vtanh.pop %v1831
    %v1834 = vtanh.pop %v1832
    %v1835 = vmul.f32 %v1816, %v1833
    %v1836 = vmul.f32 %v1818, %v1834
    %v1837 = vpack.c.bf16 %v1835, %v1835
    %v1838 = vpack.c.bf16 %v1836, %v1836
    %1839 = vmatprep.subr.bf16.mxu0 %v488
    %1840 = vmatpush1.bf16.msra.mxu0 %v487
    %1841 = vmatprep.subr.bf16.mxu0 %v496
    %1842 = vmatpush1.bf16.msra.mxu0 %v495
    %1843 = vmatprep.subr.bf16.mxu0 %v504
    %1844 = vmatpush1.bf16.msra.mxu0 %v503
    %1845 = vmatprep.subr.bf16.mxu0 %v512
    %1846 = vmatpush1.bf16.msra.mxu0 %v511
    %1847 = vmatprep.subr.bf16.mxu0 %v520
    %1848 = vmatpush1.bf16.msra.mxu0 %v519
    %1849 = vmatprep.subr.bf16.mxu0 %v528
    %1850 = vmatpush1.bf16.msra.mxu0 %v527
    %1851 = vmatprep.subr.bf16.mxu0 %v536
    %1852 = vmatpush1.bf16.msra.mxu0 %v535
    %1853 = vmatprep.subr.bf16.mxu0 %v544
    %1854 = vmatpush1.bf16.msra.mxu0 %v543
    %1855 = vmatprep.subr.bf16.mxu0 %v552
    %1856 = vmatpush1.bf16.msra.mxu0 %v551
    %1857 = vmatprep.subr.bf16.mxu0 %v560
    %1858 = vmatpush1.bf16.msra.mxu0 %v559
    %1859 = vmatprep.subr.bf16.mxu0 %v568
    %1860 = vmatpush1.bf16.msra.mxu0 %v567
    %1861 = vmatprep.subr.bf16.mxu0 %v576
    %1862 = vmatpush1.bf16.msra.mxu0 %v575
    %1863 = vmatprep.subr.bf16.mxu0 %v584
    %1864 = vmatpush1.bf16.msra.mxu0 %v583
    %1865 = vmatprep.subr.bf16.mxu0 %v592
    %1866 = vmatpush1.bf16.msra.mxu0 %v591
    %1867 = vmatprep.subr.bf16.mxu0 %v600
    %1868 = vmatpush1.bf16.msra.mxu0 %v599
    %1869 = vmatprep.subr.bf16.mxu0 %v608
    %1870 = vmatpush1.bf16.msra.mxu0 %v607
    %1871 = vmatprep.mubr.bf16.mxu0 %v1838
    %1872 = vmatmul.mubr.bf16.gmra.mrb[0].mxu0 %v1837
    %v1873 = vpop.f32.mrb[0].mxu0
    %v1874 = vadd.f32 0.0, %v1873
    %v1875 = vpop.f32.mrb[0].mxu0
    %v1876 = vadd.f32 0.0, %v1875
    %v1877 = vpop.f32.mrb[0].mxu0
    %v1878 = vpop.f32.mrb[0].mxu0
    %1879 = vdwg.mxu0
    %1880 = vmatprep.subr.bf16.mxu0 %v490
    %1881 = vmatpush1.bf16.msra.mxu0 %v489
    %1882 = vmatprep.subr.bf16.mxu0 %v498
    %1883 = vmatpush1.bf16.msra.mxu0 %v497
    %1884 = vmatprep.subr.bf16.mxu0 %v506
    %1885 = vmatpush1.bf16.msra.mxu0 %v505
    %1886 = vmatprep.subr.bf16.mxu0 %v514
    %1887 = vmatpush1.bf16.msra.mxu0 %v513
    %1888 = vmatprep.subr.bf16.mxu0 %v522
    %1889 = vmatpush1.bf16.msra.mxu0 %v521
    %1890 = vmatprep.subr.bf16.mxu0 %v530
    %1891 = vmatpush1.bf16.msra.mxu0 %v529
    %1892 = vmatprep.subr.bf16.mxu0 %v538
    %1893 = vmatpush1.bf16.msra.mxu0 %v537
    %1894 = vmatprep.subr.bf16.mxu0 %v546
    %1895 = vmatpush1.bf16.msra.mxu0 %v545
    %1896 = vmatprep.subr.bf16.mxu0 %v554
    %1897 = vmatpush1.bf16.msra.mxu0 %v553
    %1898 = vmatprep.subr.bf16.mxu0 %v562
    %1899 = vmatpush1.bf16.msra.mxu0 %v561
    %1900 = vmatprep.subr.bf16.mxu0 %v570
    %1901 = vmatpush1.bf16.msra.mxu0 %v569
    %1902 = vmatprep.subr.bf16.mxu0 %v578
    %1903 = vmatpush1.bf16.msra.mxu0 %v577
    %1904 = vmatprep.subr.bf16.mxu0 %v586
    %1905 = vmatpush1.bf16.msra.mxu0 %v585
    %1906 = vmatprep.subr.bf16.mxu0 %v594
    %1907 = vmatpush1.bf16.msra.mxu0 %v593
    %1908 = vmatprep.subr.bf16.mxu0 %v602
    %1909 = vmatpush1.bf16.msra.mxu0 %v601
    %1910 = vmatprep.subr.bf16.mxu0 %v610
    %1911 = vmatpush1.bf16.msra.mxu0 %v609
    %1912 = vmatprep.mubr.bf16.mxu0 %v1838
    %1913 = vmatmul.mubr.bf16.gmra.mrb[0].mxu0 %v1837
    %v1914 = vpop.f32.mrb[0].mxu0
    %v1915 = vadd.f32 0.0, %v1914
    %v1916 = vpop.f32.mrb[0].mxu0
    %v1917 = vadd.f32 0.0, %v1916
    %v1918 = vpop.f32.mrb[0].mxu0
    %v1919 = vpop.f32.mrb[0].mxu0
    %1920 = vdwg.mxu0
    %1921 = vmatprep.subr.bf16.mxu0 %v492
    %1922 = vmatpush1.bf16.msra.mxu0 %v491
    %1923 = vmatprep.subr.bf16.mxu0 %v500
    %1924 = vmatpush1.bf16.msra.mxu0 %v499
    %1925 = vmatprep.subr.bf16.mxu0 %v508
    %1926 = vmatpush1.bf16.msra.mxu0 %v507
    %1927 = vmatprep.subr.bf16.mxu0 %v516
    %1928 = vmatpush1.bf16.msra.mxu0 %v515
    %1929 = vmatprep.subr.bf16.mxu0 %v524
    %1930 = vmatpush1.bf16.msra.mxu0 %v523
    %1931 = vmatprep.subr.bf16.mxu0 %v532
    %1932 = vmatpush1.bf16.msra.mxu0 %v531
    %1933 = vmatprep.subr.bf16.mxu0 %v540
    %1934 = vmatpush1.bf16.msra.mxu0 %v539
    %1935 = vmatprep.subr.bf16.mxu0 %v548
    %1936 = vmatpush1.bf16.msra.mxu0 %v547
    %1937 = vmatprep.subr.bf16.mxu0 %v556
    %1938 = vmatpush1.bf16.msra.mxu0 %v555
    %1939 = vmatprep.subr.bf16.mxu0 %v564
    %1940 = vmatpush1.bf16.msra.mxu0 %v563
    %1941 = vmatprep.subr.bf16.mxu0 %v572
    %1942 = vmatpush1.bf16.msra.mxu0 %v571
    %1943 = vmatprep.subr.bf16.mxu0 %v580
    %1944 = vmatpush1.bf16.msra.mxu0 %v579
    %1945 = vmatprep.subr.bf16.mxu0 %v588
    %1946 = vmatpush1.bf16.msra.mxu0 %v587
    %1947 = vmatprep.subr.bf16.mxu0 %v596
    %1948 = vmatpush1.bf16.msra.mxu0 %v595
    %1949 = vmatprep.subr.bf16.mxu0 %v604
    %1950 = vmatpush1.bf16.msra.mxu0 %v603
    %1951 = vmatprep.subr.bf16.mxu0 %v612
    %1952 = vmatpush1.bf16.msra.mxu0 %v611
    %1953 = vmatprep.mubr.bf16.mxu0 %v1838
    %1954 = vmatmul.mubr.bf16.gmra.mrb[0].mxu0 %v1837
    %v1955 = vpop.f32.mrb[0].mxu0
    %v1956 = vadd.f32 0.0, %v1955
    %v1957 = vpop.f32.mrb[0].mxu0
    %v1958 = vadd.f32 0.0, %v1957
    %v1959 = vpop.f32.mrb[0].mxu0
    %v1960 = vpop.f32.mrb[0].mxu0
    %1961 = vdwg.mxu0
    %1962 = vmatprep.subr.bf16.mxu0 %v494
    %1963 = vmatpush1.bf16.msra.mxu0 %v493
    %1964 = vmatprep.subr.bf16.mxu0 %v502
    %1965 = vmatpush1.bf16.msra.mxu0 %v501
    %1966 = vmatprep.subr.bf16.mxu0 %v510
    %1967 = vmatpush1.bf16.msra.mxu0 %v509
    %1968 = vmatprep.subr.bf16.mxu0 %v518
    %1969 = vmatpush1.bf16.msra.mxu0 %v517
    %1970 = vmatprep.subr.bf16.mxu0 %v526
    %1971 = vmatpush1.bf16.msra.mxu0 %v525
    %1972 = vmatprep.subr.bf16.mxu0 %v534
    %1973 = vmatpush1.bf16.msra.mxu0 %v533
    %1974 = vmatprep.subr.bf16.mxu0 %v542
    %1975 = vmatpush1.bf16.msra.mxu0 %v541
    %1976 = vmatprep.subr.bf16.mxu0 %v550
    %1977 = vmatpush1.bf16.msra.mxu0 %v549
    %1978 = vmatprep.subr.bf16.mxu0 %v558
    %1979 = vmatpush1.bf16.msra.mxu0 %v557
    %1980 = vmatprep.subr.bf16.mxu0 %v566
    %1981 = vmatpush1.bf16.msra.mxu0 %v565
    %1982 = vmatprep.subr.bf16.mxu0 %v574
    %1983 = vmatpush1.bf16.msra.mxu0 %v573
    %1984 = vmatprep.subr.bf16.mxu0 %v582
    %1985 = vmatpush1.bf16.msra.mxu0 %v581
    %1986 = vmatprep.subr.bf16.mxu0 %v590
    %1987 = vmatpush1.bf16.msra.mxu0 %v589
    %1988 = vmatprep.subr.bf16.mxu0 %v598
    %1989 = vmatpush1.bf16.msra.mxu0 %v597
    %1990 = vmatprep.subr.bf16.mxu0 %v606
    %1991 = vmatpush1.bf16.msra.mxu0 %v605
    %1992 = vmatprep.subr.bf16.mxu0 %v614
    %1993 = vmatpush1.bf16.msra.mxu0 %v613
    %1994 = vmatprep.mubr.bf16.mxu0 %v1838
    %1995 = vmatmul.mubr.bf16.gmra.mrb[0].mxu0 %v1837
    %v1996 = vpop.f32.mrb[0].mxu0
    %v1997 = vadd.f32 0.0, %v1996
    %v1998 = vpop.f32.mrb[0].mxu0
    %v1999 = vadd.f32 0.0, %v1998
    %v2000 = vpop.f32.mrb[0].mxu0
    %v2001 = vpop.f32.mrb[0].mxu0
    %2002 = vdwg.mxu0
    %v2011 = vrot.slane %v1874, 6
    %v2012 = vrot.slane %v1876, 6
    %v2013 = vrot.slane %v1915, 6
    %v2014 = vrot.slane %v1917, 6
    %v2015 = vrot.slane %v1956, 6
    %v2016 = vrot.slane %v1958, 6
    %v2017 = vrot.slane %v1997, 6
    %v2018 = vrot.slane %v1999, 6
    %v2027 = vadd.f32 %v350, %v2011
    %v2028 = vadd.f32 %v352, %v2012
    %v2029 = vadd.f32 %v393, %v2013
    %v2030 = vadd.f32 %v395, %v2014
    %v2031 = vadd.f32 %v436, %v2015
    %v2032 = vadd.f32 %v438, %v2016
    %v2033 = vadd.f32 %v479, %v2017
    %v2034 = vadd.f32 %v481, %v2018
    %v2035 = vxor.u32 %v2027, 2147483648
    %v2036 = vxor.u32 %v2028, 2147483648
    %v2037 = vxor.u32 %v2029, 2147483648
    %v2038 = vxor.u32 %v2030, 2147483648
    %v2039 = vxor.u32 %v2031, 2147483648
    %v2040 = vxor.u32 %v2032, 2147483648
    %v2041 = vmul.f32 %v2035, 1.442695
    %v2042 = vpow.pop %v2041
    %v2043 = vmul.f32 %v2036, 1.442695
    %v2044 = vpow.pop %v2043
    %v2045 = vmul.f32 %v2037, 1.442695
    %v2046 = vpow.pop %v2045
    %v2047 = vmul.f32 %v2038, 1.442695
    %v2048 = vpow.pop %v2047
    %v2049 = vmul.f32 %v2039, 1.442695
    %v2050 = vpow.pop %v2049
    %v2051 = vmul.f32 %v2040, 1.442695
    %v2052 = vpow.pop %v2051
    %v2053 = vadd.f32 %v2042, 1.0
    %v2054 = vadd.f32 %v2044, 1.0
    %v2055 = vadd.f32 %v2046, 1.0
    %v2056 = vadd.f32 %v2048, 1.0
    %v2057 = vadd.f32 %v2050, 1.0
    %v2058 = vadd.f32 %v2052, 1.0
    %v2059 = vrcp.pop %v2053
    %v2060 = vmul.f32 1.0, %v2059
    %v2061 = vrcp.pop %v2054
    %v2062 = vmul.f32 1.0, %v2061
    %v2063 = vrcp.pop %v2055
    %v2064 = vmul.f32 1.0, %v2063
    %v2065 = vrcp.pop %v2056
    %v2066 = vmul.f32 1.0, %v2065
    %v2067 = vrcp.pop %v2057
    %v2068 = vmul.f32 1.0, %v2067
    %v2069 = vrcp.pop %v2058
    %v2070 = vmul.f32 1.0, %v2069
    %v2071 = vtanh.pop %v2033
    %v2072 = vtanh.pop %v2034
    %v2075 = vrot.slane %v1831, 6
    %v2076 = vrot.slane %v1832, 6
    %v2079 = vmul.f32 %v2064, %v2075
    %v2080 = vmul.f32 %v2066, %v2076
    %v2081 = vmul.f32 %v2060, %v2071
    %v2082 = vmul.f32 %v2062, %v2072
    %v2083 = vadd.f32 %v2079, %v2081
    %v2084 = vadd.f32 %v2080, %v2082
    %v2085 = vtanh.pop %v2083
    %v2086 = vtanh.pop %v2084
    %v2087 = vmul.f32 %v2068, %v2085
    %v2088 = vmul.f32 %v2070, %v2086
    %v2089 = vpack.c.bf16 %v2087, %v2087
    %v2090 = vpack.c.bf16 %v2088, %v2088
    %v2093 = vrot.slane %v2089, 1
    %v2094 = vrot.slane %v2090, 1
    %2097 = vmatprep.subr.bf16.mxu0 %v488
    %2098 = vmatpush1.bf16.msra.mxu0 %v487
    %2099 = vmatprep.subr.bf16.mxu0 %v496
    %2100 = vmatpush1.bf16.msra.mxu0 %v495
    %2101 = vmatprep.subr.bf16.mxu0 %v504
    %2102 = vmatpush1.bf16.msra.mxu0 %v503
    %2103 = vmatprep.subr.bf16.mxu0 %v512
    %2104 = vmatpush1.bf16.msra.mxu0 %v511
    %2105 = vmatprep.subr.bf16.mxu0 %v520
    %2106 = vmatpush1.bf16.msra.mxu0 %v519
    %2107 = vmatprep.subr.bf16.mxu0 %v528
    %2108 = vmatpush1.bf16.msra.mxu0 %v527
    %2109 = vmatprep.subr.bf16.mxu0 %v536
    %2110 = vmatpush1.bf16.msra.mxu0 %v535
    %2111 = vmatprep.subr.bf16.mxu0 %v544
    %2112 = vmatpush1.bf16.msra.mxu0 %v543
    %2113 = vmatprep.subr.bf16.mxu0 %v552
    %2114 = vmatpush1.bf16.msra.mxu0 %v551
    %2115 = vmatprep.subr.bf16.mxu0 %v560
    %2116 = vmatpush1.bf16.msra.mxu0 %v559
    %2117 = vmatprep.subr.bf16.mxu0 %v568
    %2118 = vmatpush1.bf16.msra.mxu0 %v567
    %2119 = vmatprep.subr.bf16.mxu0 %v576
    %2120 = vmatpush1.bf16.msra.mxu0 %v575
    %2121 = vmatprep.subr.bf16.mxu0 %v584
    %2122 = vmatpush1.bf16.msra.mxu0 %v583
    %2123 = vmatprep.subr.bf16.mxu0 %v592
    %2124 = vmatpush1.bf16.msra.mxu0 %v591
    %2125 = vmatprep.subr.bf16.mxu0 %v600
    %2126 = vmatpush1.bf16.msra.mxu0 %v599
    %2127 = vmatprep.subr.bf16.mxu0 %v608
    %2128 = vmatpush1.bf16.msra.mxu0 %v607
    %2129 = vmatprep.mubr.bf16.mxu0 %v2094
    %2130 = vmatmul.mubr.bf16.gmra.mrb[0].mxu0 %v2093
    %v2131 = vpop.f32.mrb[0].mxu0
    %v2132 = vadd.f32 0.0, %v2131
    %v2133 = vpop.f32.mrb[0].mxu0
    %v2134 = vadd.f32 0.0, %v2133
    %v2135 = vpop.f32.mrb[0].mxu0
    %v2136 = vpop.f32.mrb[0].mxu0
    %2137 = vdwg.mxu0
    %2138 = vmatprep.subr.bf16.mxu0 %v490
    %2139 = vmatpush1.bf16.msra.mxu0 %v489
    %2140 = vmatprep.subr.bf16.mxu0 %v498
    %2141 = vmatpush1.bf16.msra.mxu0 %v497
    %2142 = vmatprep.subr.bf16.mxu0 %v506
    %2143 = vmatpush1.bf16.msra.mxu0 %v505
    %2144 = vmatprep.subr.bf16.mxu0 %v514
    %2145 = vmatpush1.bf16.msra.mxu0 %v513
    %2146 = vmatprep.subr.bf16.mxu0 %v522
    %2147 = vmatpush1.bf16.msra.mxu0 %v521
    %2148 = vmatprep.subr.bf16.mxu0 %v530
    %2149 = vmatpush1.bf16.msra.mxu0 %v529
    %2150 = vmatprep.subr.bf16.mxu0 %v538
    %2151 = vmatpush1.bf16.msra.mxu0 %v537
    %2152 = vmatprep.subr.bf16.mxu0 %v546
    %2153 = vmatpush1.bf16.msra.mxu0 %v545
    %2154 = vmatprep.subr.bf16.mxu0 %v554
    %2155 = vmatpush1.bf16.msra.mxu0 %v553
    %2156 = vmatprep.subr.bf16.mxu0 %v562
    %2157 = vmatpush1.bf16.msra.mxu0 %v561
    %2158 = vmatprep.subr.bf16.mxu0 %v570
    %2159 = vmatpush1.bf16.msra.mxu0 %v569
    %2160 = vmatprep.subr.bf16.mxu0 %v578
    %2161 = vmatpush1.bf16.msra.mxu0 %v577
    %2162 = vmatprep.subr.bf16.mxu0 %v586
    %2163 = vmatpush1.bf16.msra.mxu0 %v585
    %2164 = vmatprep.subr.bf16.mxu0 %v594
    %2165 = vmatpush1.bf16.msra.mxu0 %v593
    %2166 = vmatprep.subr.bf16.mxu0 %v602
    %2167 = vmatpush1.bf16.msra.mxu0 %v601
    %2168 = vmatprep.subr.bf16.mxu0 %v610
    %2169 = vmatpush1.bf16.msra.mxu0 %v609
    %2170 = vmatprep.mubr.bf16.mxu0 %v2094
    %2171 = vmatmul.mubr.bf16.gmra.mrb[0].mxu0 %v2093
    %v2172 = vpop.f32.mrb[0].mxu0
    %v2173 = vadd.f32 0.0, %v2172
    %v2174 = vpop.f32.mrb[0].mxu0
    %v2175 = vadd.f32 0.0, %v2174
    %v2176 = vpop.f32.mrb[0].mxu0
    %v2177 = vpop.f32.mrb[0].mxu0
    %2178 = vdwg.mxu0
    %2179 = vmatprep.subr.bf16.mxu0 %v492
    %2180 = vmatpush1.bf16.msra.mxu0 %v491
    %2181 = vmatprep.subr.bf16.mxu0 %v500
    %2182 = vmatpush1.bf16.msra.mxu0 %v499
    %2183 = vmatprep.subr.bf16.mxu0 %v508
    %2184 = vmatpush1.bf16.msra.mxu0 %v507
    %2185 = vmatprep.subr.bf16.mxu0 %v516
    %2186 = vmatpush1.bf16.msra.mxu0 %v515
    %2187 = vmatprep.subr.bf16.mxu0 %v524
    %2188 = vmatpush1.bf16.msra.mxu0 %v523
    %2189 = vmatprep.subr.bf16.mxu0 %v532
    %2190 = vmatpush1.bf16.msra.mxu0 %v531
    %2191 = vmatprep.subr.bf16.mxu0 %v540
    %2192 = vmatpush1.bf16.msra.mxu0 %v539
    %2193 = vmatprep.subr.bf16.mxu0 %v548
    %2194 = vmatpush1.bf16.msra.mxu0 %v547
    %2195 = vmatprep.subr.bf16.mxu0 %v556
    %2196 = vmatpush1.bf16.msra.mxu0 %v555
    %2197 = vmatprep.subr.bf16.mxu0 %v564
    %2198 = vmatpush1.bf16.msra.mxu0 %v563
    %2199 = vmatprep.subr.bf16.mxu0 %v572
    %2200 = vmatpush1.bf16.msra.mxu0 %v571
    %2201 = vmatprep.subr.bf16.mxu0 %v580
    %2202 = vmatpush1.bf16.msra.mxu0 %v579
    %2203 = vmatprep.subr.bf16.mxu0 %v588
    %2204 = vmatpush1.bf16.msra.mxu0 %v587
    %2205 = vmatprep.subr.bf16.mxu0 %v596
    %2206 = vmatpush1.bf16.msra.mxu0 %v595
    %2207 = vmatprep.subr.bf16.mxu0 %v604
    %2208 = vmatpush1.bf16.msra.mxu0 %v603
    %2209 = vmatprep.subr.bf16.mxu0 %v612
    %2210 = vmatpush1.bf16.msra.mxu0 %v611
    %2211 = vmatprep.mubr.bf16.mxu0 %v2094
    %2212 = vmatmul.mubr.bf16.gmra.mrb[0].mxu0 %v2093
    %v2213 = vpop.f32.mrb[0].mxu0
    %v2214 = vadd.f32 0.0, %v2213
    %v2215 = vpop.f32.mrb[0].mxu0
    %v2216 = vadd.f32 0.0, %v2215
    %v2217 = vpop.f32.mrb[0].mxu0
    %v2218 = vpop.f32.mrb[0].mxu0
    %2219 = vdwg.mxu0
    %2220 = vmatprep.subr.bf16.mxu0 %v494
    %2221 = vmatpush1.bf16.msra.mxu0 %v493
    %2222 = vmatprep.subr.bf16.mxu0 %v502
    %2223 = vmatpush1.bf16.msra.mxu0 %v501
    %2224 = vmatprep.subr.bf16.mxu0 %v510
    %2225 = vmatpush1.bf16.msra.mxu0 %v509
    %2226 = vmatprep.subr.bf16.mxu0 %v518
    %2227 = vmatpush1.bf16.msra.mxu0 %v517
    %2228 = vmatprep.subr.bf16.mxu0 %v526
    %2229 = vmatpush1.bf16.msra.mxu0 %v525
    %2230 = vmatprep.subr.bf16.mxu0 %v534
    %2231 = vmatpush1.bf16.msra.mxu0 %v533
    %2232 = vmatprep.subr.bf16.mxu0 %v542
    %2233 = vmatpush1.bf16.msra.mxu0 %v541
    %2234 = vmatprep.subr.bf16.mxu0 %v550
    %2235 = vmatpush1.bf16.msra.mxu0 %v549
    %2236 = vmatprep.subr.bf16.mxu0 %v558
    %2237 = vmatpush1.bf16.msra.mxu0 %v557
    %2238 = vmatprep.subr.bf16.mxu0 %v566
    %2239 = vmatpush1.bf16.msra.mxu0 %v565
    %2240 = vmatprep.subr.bf16.mxu0 %v574
    %2241 = vmatpush1.bf16.msra.mxu0 %v573
    %2242 = vmatprep.subr.bf16.mxu0 %v582
    %2243 = vmatpush1.bf16.msra.mxu0 %v581
    %2244 = vmatprep.subr.bf16.mxu0 %v590
    %2245 = vmatpush1.bf16.msra.mxu0 %v589
    %2246 = vmatprep.subr.bf16.mxu0 %v598
    %2247 = vmatpush1.bf16.msra.mxu0 %v597
    %2248 = vmatprep.subr.bf16.mxu0 %v606
    %2249 = vmatpush1.bf16.msra.mxu0 %v605
    %2250 = vmatprep.subr.bf16.mxu0 %v614
    %2251 = vmatpush1.bf16.msra.mxu0 %v613
    %2252 = vmatprep.mubr.bf16.mxu0 %v2094
    %2253 = vmatmul.mubr.bf16.gmra.mrb[0].mxu0 %v2093
    %v2254 = vpop.f32.mrb[0].mxu0
    %v2255 = vadd.f32 0.0, %v2254
    %v2256 = vpop.f32.mrb[0].mxu0
    %v2257 = vadd.f32 0.0, %v2256
    %v2258 = vpop.f32.mrb[0].mxu0
    %v2259 = vpop.f32.mrb[0].mxu0
    %2260 = vdwg.mxu0
    %v2269 = vrot.slane %v2132, 4
    %v2270 = vrot.slane %v2134, 4
    %v2271 = vrot.slane %v2173, 4
    %v2272 = vrot.slane %v2175, 4
    %v2273 = vrot.slane %v2214, 4
    %v2274 = vrot.slane %v2216, 4
    %v2275 = vrot.slane %v2255, 4
    %v2276 = vrot.slane %v2257, 4
    %v2285 = vadd.f32 %v350, %v2269
    %v2286 = vadd.f32 %v352, %v2270
    %v2287 = vadd.f32 %v393, %v2271
    %v2288 = vadd.f32 %v395, %v2272
    %v2289 = vadd.f32 %v436, %v2273
    %v2290 = vadd.f32 %v438, %v2274
    %v2291 = vadd.f32 %v479, %v2275
    %v2292 = vadd.f32 %v481, %v2276
    %v2293 = vxor.u32 %v2285, 2147483648
    %v2294 = vxor.u32 %v2286, 2147483648
    %v2295 = vxor.u32 %v2287, 2147483648
    %v2296 = vxor.u32 %v2288, 2147483648
    %v2297 = vxor.u32 %v2289, 2147483648
    %v2298 = vxor.u32 %v2290, 2147483648
    %v2299 = vmul.f32 %v2293, 1.442695
    %v2300 = vpow.pop %v2299
    %v2301 = vmul.f32 %v2294, 1.442695
    %v2302 = vpow.pop %v2301
    %v2303 = vmul.f32 %v2295, 1.442695
    %v2304 = vpow.pop %v2303
    %v2305 = vmul.f32 %v2296, 1.442695
    %v2306 = vpow.pop %v2305
    %v2307 = vmul.f32 %v2297, 1.442695
    %v2308 = vpow.pop %v2307
    %v2309 = vmul.f32 %v2298, 1.442695
    %v2310 = vpow.pop %v2309
    %v2311 = vadd.f32 %v2300, 1.0
    %v2312 = vadd.f32 %v2302, 1.0
    %v2313 = vadd.f32 %v2304, 1.0
    %v2314 = vadd.f32 %v2306, 1.0
    %v2315 = vadd.f32 %v2308, 1.0
    %v2316 = vadd.f32 %v2310, 1.0
    %v2317 = vrcp.pop %v2311
    %v2318 = vmul.f32 1.0, %v2317
    %v2319 = vrcp.pop %v2312
    %v2320 = vmul.f32 1.0, %v2319
    %v2321 = vrcp.pop %v2313
    %v2322 = vmul.f32 1.0, %v2321
    %v2323 = vrcp.pop %v2314
    %v2324 = vmul.f32 1.0, %v2323
    %v2325 = vrcp.pop %v2315
    %v2326 = vmul.f32 1.0, %v2325
    %v2327 = vrcp.pop %v2316
    %v2328 = vmul.f32 1.0, %v2327
    %v2329 = vtanh.pop %v2291
    %v2330 = vtanh.pop %v2292
    %v2333 = vrot.slane %v2083, 6
    %v2334 = vrot.slane %v2084, 6
    %v2337 = vmul.f32 %v2322, %v2333
    %v2338 = vmul.f32 %v2324, %v2334
    %v2339 = vmul.f32 %v2318, %v2329
    %v2340 = vmul.f32 %v2320, %v2330
    %v2341 = vadd.f32 %v2337, %v2339
    %v2342 = vadd.f32 %v2338, %v2340
    %v2343 = vtanh.pop %v2341
    %v2344 = vtanh.pop %v2342
    %v2345 = vmul.f32 %v2326, %v2343
    %v2346 = vmul.f32 %v2328, %v2344
    %v2347 = vpack.c.bf16 %v2345, %v2345
    %v2348 = vpack.c.bf16 %v2346, %v2346
    %v2351 = vrot.slane %v2347, 2
    %v2352 = vrot.slane %v2348, 2
    %2355 = vmatprep.subr.bf16.mxu0 %v488
    %2356 = vmatpush1.bf16.msra.mxu0 %v487
    %2357 = vmatprep.subr.bf16.mxu0 %v496
    %2358 = vmatpush1.bf16.msra.mxu0 %v495
    %2359 = vmatprep.subr.bf16.mxu0 %v504
    %2360 = vmatpush1.bf16.msra.mxu0 %v503
    %2361 = vmatprep.subr.bf16.mxu0 %v512
    %2362 = vmatpush1.bf16.msra.mxu0 %v511
    %2363 = vmatprep.subr.bf16.mxu0 %v520
    %2364 = vmatpush1.bf16.msra.mxu0 %v519
    %2365 = vmatprep.subr.bf16.mxu0 %v528
    %2366 = vmatpush1.bf16.msra.mxu0 %v527
    %2367 = vmatprep.subr.bf16.mxu0 %v536
    %2368 = vmatpush1.bf16.msra.mxu0 %v535
    %2369 = vmatprep.subr.bf16.mxu0 %v544
    %2370 = vmatpush1.bf16.msra.mxu0 %v543
    %2371 = vmatprep.subr.bf16.mxu0 %v552
    %2372 = vmatpush1.bf16.msra.mxu0 %v551
    %2373 = vmatprep.subr.bf16.mxu0 %v560
    %2374 = vmatpush1.bf16.msra.mxu0 %v559
    %2375 = vmatprep.subr.bf16.mxu0 %v568
    %2376 = vmatpush1.bf16.msra.mxu0 %v567
    %2377 = vmatprep.subr.bf16.mxu0 %v576
    %2378 = vmatpush1.bf16.msra.mxu0 %v575
    %2379 = vmatprep.subr.bf16.mxu0 %v584
    %2380 = vmatpush1.bf16.msra.mxu0 %v583
    %2381 = vmatprep.subr.bf16.mxu0 %v592
    %2382 = vmatpush1.bf16.msra.mxu0 %v591
    %2383 = vmatprep.subr.bf16.mxu0 %v600
    %2384 = vmatpush1.bf16.msra.mxu0 %v599
    %2385 = vmatprep.subr.bf16.mxu0 %v608
    %2386 = vmatpush1.bf16.msra.mxu0 %v607
    %2387 = vmatprep.mubr.bf16.mxu0 %v2352
    %2388 = vmatmul.mubr.bf16.gmra.mrb[0].mxu0 %v2351
    %v2389 = vpop.f32.mrb[0].mxu0
    %v2390 = vadd.f32 0.0, %v2389
    %v2391 = vpop.f32.mrb[0].mxu0
    %v2392 = vadd.f32 0.0, %v2391
    %v2393 = vpop.f32.mrb[0].mxu0
    %v2394 = vpop.f32.mrb[0].mxu0
    %2395 = vdwg.mxu0
    %2396 = vmatprep.subr.bf16.mxu0 %v490
    %2397 = vmatpush1.bf16.msra.mxu0 %v489
    %2398 = vmatprep.subr.bf16.mxu0 %v498
    %2399 = vmatpush1.bf16.msra.mxu0 %v497
    %2400 = vmatprep.subr.bf16.mxu0 %v506
    %2401 = vmatpush1.bf16.msra.mxu0 %v505
    %2402 = vmatprep.subr.bf16.mxu0 %v514
    %2403 = vmatpush1.bf16.msra.mxu0 %v513
    %2404 = vmatprep.subr.bf16.mxu0 %v522
    %2405 = vmatpush1.bf16.msra.mxu0 %v521
    %2406 = vmatprep.subr.bf16.mxu0 %v530
    %2407 = vmatpush1.bf16.msra.mxu0 %v529
    %2408 = vmatprep.subr.bf16.mxu0 %v538
    %2409 = vmatpush1.bf16.msra.mxu0 %v537
    %2410 = vmatprep.subr.bf16.mxu0 %v546
    %2411 = vmatpush1.bf16.msra.mxu0 %v545
    %2412 = vmatprep.subr.bf16.mxu0 %v554
    %2413 = vmatpush1.bf16.msra.mxu0 %v553
    %2414 = vmatprep.subr.bf16.mxu0 %v562
    %2415 = vmatpush1.bf16.msra.mxu0 %v561
    %2416 = vmatprep.subr.bf16.mxu0 %v570
    %2417 = vmatpush1.bf16.msra.mxu0 %v569
    %2418 = vmatprep.subr.bf16.mxu0 %v578
    %2419 = vmatpush1.bf16.msra.mxu0 %v577
    %2420 = vmatprep.subr.bf16.mxu0 %v586
    %2421 = vmatpush1.bf16.msra.mxu0 %v585
    %2422 = vmatprep.subr.bf16.mxu0 %v594
    %2423 = vmatpush1.bf16.msra.mxu0 %v593
    %2424 = vmatprep.subr.bf16.mxu0 %v602
    %2425 = vmatpush1.bf16.msra.mxu0 %v601
    %2426 = vmatprep.subr.bf16.mxu0 %v610
    %2427 = vmatpush1.bf16.msra.mxu0 %v609
    %2428 = vmatprep.mubr.bf16.mxu0 %v2352
    %2429 = vmatmul.mubr.bf16.gmra.mrb[0].mxu0 %v2351
    %v2430 = vpop.f32.mrb[0].mxu0
    %v2431 = vadd.f32 0.0, %v2430
    %v2432 = vpop.f32.mrb[0].mxu0
    %v2433 = vadd.f32 0.0, %v2432
    %v2434 = vpop.f32.mrb[0].mxu0
    %v2435 = vpop.f32.mrb[0].mxu0
    %2436 = vdwg.mxu0
    %2437 = vmatprep.subr.bf16.mxu0 %v492
    %2438 = vmatpush1.bf16.msra.mxu0 %v491
    %2439 = vmatprep.subr.bf16.mxu0 %v500
    %2440 = vmatpush1.bf16.msra.mxu0 %v499
    %2441 = vmatprep.subr.bf16.mxu0 %v508
    %2442 = vmatpush1.bf16.msra.mxu0 %v507
    %2443 = vmatprep.subr.bf16.mxu0 %v516
    %2444 = vmatpush1.bf16.msra.mxu0 %v515
    %2445 = vmatprep.subr.bf16.mxu0 %v524
    %2446 = vmatpush1.bf16.msra.mxu0 %v523
    %2447 = vmatprep.subr.bf16.mxu0 %v532
    %2448 = vmatpush1.bf16.msra.mxu0 %v531
    %2449 = vmatprep.subr.bf16.mxu0 %v540
    %2450 = vmatpush1.bf16.msra.mxu0 %v539
    %2451 = vmatprep.subr.bf16.mxu0 %v548
    %2452 = vmatpush1.bf16.msra.mxu0 %v547
    %2453 = vmatprep.subr.bf16.mxu0 %v556
    %2454 = vmatpush1.bf16.msra.mxu0 %v555
    %2455 = vmatprep.subr.bf16.mxu0 %v564
    %2456 = vmatpush1.bf16.msra.mxu0 %v563
    %2457 = vmatprep.subr.bf16.mxu0 %v572
    %2458 = vmatpush1.bf16.msra.mxu0 %v571
    %2459 = vmatprep.subr.bf16.mxu0 %v580
    %2460 = vmatpush1.bf16.msra.mxu0 %v579
    %2461 = vmatprep.subr.bf16.mxu0 %v588
    %2462 = vmatpush1.bf16.msra.mxu0 %v587
    %2463 = vmatprep.subr.bf16.mxu0 %v596
    %2464 = vmatpush1.bf16.msra.mxu0 %v595
    %2465 = vmatprep.subr.bf16.mxu0 %v604
    %2466 = vmatpush1.bf16.msra.mxu0 %v603
    %2467 = vmatprep.subr.bf16.mxu0 %v612
    %2468 = vmatpush1.bf16.msra.mxu0 %v611
    %2469 = vmatprep.mubr.bf16.mxu0 %v2352
    %2470 = vmatmul.mubr.bf16.gmra.mrb[0].mxu0 %v2351
    %v2471 = vpop.f32.mrb[0].mxu0
    %v2472 = vadd.f32 0.0, %v2471
    %v2473 = vpop.f32.mrb[0].mxu0
    %v2474 = vadd.f32 0.0, %v2473
    %v2475 = vpop.f32.mrb[0].mxu0
    %v2476 = vpop.f32.mrb[0].mxu0
    %2477 = vdwg.mxu0
    %2478 = vmatprep.subr.bf16.mxu0 %v494
    %2479 = vmatpush1.bf16.msra.mxu0 %v493
    %2480 = vmatprep.subr.bf16.mxu0 %v502
    %2481 = vmatpush1.bf16.msra.mxu0 %v501
    %2482 = vmatprep.subr.bf16.mxu0 %v510
    %2483 = vmatpush1.bf16.msra.mxu0 %v509
    %2484 = vmatprep.subr.bf16.mxu0 %v518
    %2485 = vmatpush1.bf16.msra.mxu0 %v517
    %2486 = vmatprep.subr.bf16.mxu0 %v526
    %2487 = vmatpush1.bf16.msra.mxu0 %v525
    %2488 = vmatprep.subr.bf16.mxu0 %v534
    %2489 = vmatpush1.bf16.msra.mxu0 %v533
    %2490 = vmatprep.subr.bf16.mxu0 %v542
    %2491 = vmatpush1.bf16.msra.mxu0 %v541
    %2492 = vmatprep.subr.bf16.mxu0 %v550
    %2493 = vmatpush1.bf16.msra.mxu0 %v549
    %2494 = vmatprep.subr.bf16.mxu0 %v558
    %2495 = vmatpush1.bf16.msra.mxu0 %v557
    %2496 = vmatprep.subr.bf16.mxu0 %v566
    %2497 = vmatpush1.bf16.msra.mxu0 %v565
    %2498 = vmatprep.subr.bf16.mxu0 %v574
    %2499 = vmatpush1.bf16.msra.mxu0 %v573
    %2500 = vmatprep.subr.bf16.mxu0 %v582
    %2501 = vmatpush1.bf16.msra.mxu0 %v581
    %2502 = vmatprep.subr.bf16.mxu0 %v590
    %2503 = vmatpush1.bf16.msra.mxu0 %v589
    %2504 = vmatprep.subr.bf16.mxu0 %v598
    %2505 = vmatpush1.bf16.msra.mxu0 %v597
    %2506 = vmatprep.subr.bf16.mxu0 %v606
    %2507 = vmatpush1.bf16.msra.mxu0 %v605
    %2508 = vmatprep.subr.bf16.mxu0 %v614
    %2509 = vmatpush1.bf16.msra.mxu0 %v613
    %2510 = vmatprep.mubr.bf16.mxu0 %v2352
    %2511 = vmatmul.mubr.bf16.gmra.mrb[0].mxu0 %v2351
    %v2512 = vpop.f32.mrb[0].mxu0
    %v2513 = vadd.f32 0.0, %v2512
    %v2514 = vpop.f32.mrb[0].mxu0
    %v2515 = vadd.f32 0.0, %v2514
    %v2516 = vpop.f32.mrb[0].mxu0
    %v2517 = vpop.f32.mrb[0].mxu0
    %2518 = vdwg.mxu0
    %v2527 = vrot.slane %v2390, 2
    %v2528 = vrot.slane %v2392, 2
    %v2529 = vrot.slane %v2431, 2
    %v2530 = vrot.slane %v2433, 2
    %v2531 = vrot.slane %v2472, 2
    %v2532 = vrot.slane %v2474, 2
    %v2533 = vrot.slane %v2513, 2
    %v2534 = vrot.slane %v2515, 2
    %v2543 = vadd.f32 %v350, %v2527
    %v2544 = vadd.f32 %v352, %v2528
    %v2545 = vadd.f32 %v393, %v2529
    %v2546 = vadd.f32 %v395, %v2530
    %v2547 = vadd.f32 %v436, %v2531
    %v2548 = vadd.f32 %v438, %v2532
    %v2549 = vadd.f32 %v479, %v2533
    %v2550 = vadd.f32 %v481, %v2534
    %v2551 = vxor.u32 %v2543, 2147483648
    %v2552 = vxor.u32 %v2544, 2147483648
    %v2553 = vxor.u32 %v2545, 2147483648
    %v2554 = vxor.u32 %v2546, 2147483648
    %v2555 = vxor.u32 %v2547, 2147483648
    %v2556 = vxor.u32 %v2548, 2147483648
    %v2557 = vmul.f32 %v2551, 1.442695
    %v2558 = vpow.pop %v2557
    %v2559 = vmul.f32 %v2552, 1.442695
    %v2560 = vpow.pop %v2559
    %v2561 = vmul.f32 %v2553, 1.442695
    %v2562 = vpow.pop %v2561
    %v2563 = vmul.f32 %v2554, 1.442695
    %v2564 = vpow.pop %v2563
    %v2565 = vmul.f32 %v2555, 1.442695
    %v2566 = vpow.pop %v2565
    %v2567 = vmul.f32 %v2556, 1.442695
    %v2568 = vpow.pop %v2567
    %v2569 = vadd.f32 %v2558, 1.0
    %v2570 = vadd.f32 %v2560, 1.0
    %v2571 = vadd.f32 %v2562, 1.0
    %v2572 = vadd.f32 %v2564, 1.0
    %v2573 = vadd.f32 %v2566, 1.0
    %v2574 = vadd.f32 %v2568, 1.0
    %v2575 = vrcp.pop %v2569
    %v2576 = vmul.f32 1.0, %v2575
    %v2577 = vrcp.pop %v2570
    %v2578 = vmul.f32 1.0, %v2577
    %v2579 = vrcp.pop %v2571
    %v2580 = vmul.f32 1.0, %v2579
    %v2581 = vrcp.pop %v2572
    %v2582 = vmul.f32 1.0, %v2581
    %v2583 = vrcp.pop %v2573
    %v2584 = vmul.f32 1.0, %v2583
    %v2585 = vrcp.pop %v2574
    %v2586 = vmul.f32 1.0, %v2585
    %v2587 = vtanh.pop %v2549
    %v2588 = vtanh.pop %v2550
    %v2591 = vrot.slane %v2341, 6
    %v2592 = vrot.slane %v2342, 6
    %v2595 = vmul.f32 %v2580, %v2591
    %v2596 = vmul.f32 %v2582, %v2592
    %v2597 = vmul.f32 %v2576, %v2587
    %v2598 = vmul.f32 %v2578, %v2588
    %v2599 = vadd.f32 %v2595, %v2597
    %v2600 = vadd.f32 %v2596, %v2598
    %v2601 = vtanh.pop %v2599
    %v2602 = vtanh.pop %v2600
    %v2603 = vmul.f32 %v2584, %v2601
    %v2604 = vmul.f32 %v2586, %v2602
    %v2607 = vcombine.high %v2603, %v2604
    %v2609 = vunpack.c.l.s4 1983009808
    %v2610 = vunpack.c.0.s8 %v2609
    %v2611 = vlaneseq
    %v2612 = vshrl.u32 %v2611, 7
    %v2613 = vsub.s32 %v2610, %v2612
    %v2614 = vrot.slane %v2607, %v2613
    %v2615 = vcombine.high %v2614, %v2614
    %2617 = vst [vmem:[#allocation7] sm:$0xf] %v2615
    // Predicated region
    $region18: #{base_network_forward.1} parent=1 // pred_check
      _
    $region19: #{base_network_forward.1} parent=1 // pred_check_branch
      %2619 = sbr.rel (0) target = $region21
    $region20: #{base_network_forward.1} parent=1 // pred_region
      %s2621 = ssub.s32 64, 64
      %2622 = vsyncadd [#allocation6], %s2621
      %s2624 = sshll.u32 [#allocation7], 4
      %s2625 = int_to_ptr.vmem [resolvable:$true] %s2624
      %2627 = dma.vmem_to_hbm [thread:$0]  %s2625, 64, %s4, [#allocation6]
    $region21: #{base_network_forward.1} parent=1 // pred_fallthru
      _
    // Predicated region
    $region22: #{base_network_forward.1} parent=1 // pred_check
      _
    $region23: #{base_network_forward.1} parent=1 // pred_check_branch
      %2629 = sbr.rel (0) target = $region25
    $region24: #{base_network_forward.1} parent=1 // pred_region
      %2630 = dma.done [#allocation6], 64
    $region25: #{base_network_forward.1} parent=1 // pred_fallthru
      _
    %2631 = vsyncpa [#allocation5], 1
    %2632 = vsyncpa [#allocation6], 1
  %2633 = vsyncmov [#allocation3]
  %s2634 = vpop.sfrf %2633
  %p2635 = scmp.eq.s32.totalorder %s2634, 0
  %p2636 = pneg %p2635
  %2638 = shalt.err (%p2636)

</llo_original>
